<compile_context>
chip_gen: v7x
topology: tpu7x:2x2x1
jax: 0.10.0
libtpu: 0.0.40
codegen_flags: <defaults>
</compile_context>

<pallas_src>
import math
import functools

import jax
import jax.numpy as jnp
from jax import lax
from jax.experimental import pallas as pl
from jax.experimental.pallas import tpu as pltpu


# ----------------------------- kernel helpers -----------------------------

def _layernorm(x, gamma, beta, eps=1e-5):
    mu = jnp.mean(x, axis=-1, keepdims=True)
    var = jnp.mean((x - mu) ** 2, axis=-1, keepdims=True)
    return (x - mu) * lax.rsqrt(var + eps) * gamma + beta


def _softmax(s):
    m = jnp.max(s, axis=-1, keepdims=True)
    p = jnp.exp(s - m)
    denom = jnp.sum(p, axis=-1, keepdims=True)
    # approx reciprocal goes to the EUP slot (otherwise idle in this epilogue)
    return p * pl.reciprocal(denom, approx=True)


# ------------------------------- the kernel -------------------------------

def decoder_block_kernel(valid_ref,                     # scalar prefetch (SMEM)
                         x_ref, enc_ref,
                         wqkv1_ref, wo1_ref,
                         wq2_ref, wkv2_ref, wo2_ref,
                         g1_ref, be1_ref, g2_ref, be2_ref, g3_ref, be3_ref,
                         wf1_ref, bf1_ref, wf2_ref, bf2_ref,
                         out_ref,
                         *, T, S, num_heads, head_dim):
    b = pl.program_id(0)                                # this grid step's batch
    HD = num_heads * head_dim
    scale = 1.0 / math.sqrt(head_dim)
    bf16 = jnp.bfloat16

    x = x_ref[...]                                      # (T, D) f32
    enc = enc_ref[...]                                  # (S, D) f32

    # ---- per-batch additive -1e6 masks (f32, no integer // or %) ----------
    row = lax.broadcasted_iota(jnp.int32, (T, T), 0)
    col = lax.broadcasted_iota(jnp.int32, (T, T), 1)
    self_bias = jnp.where(col <= row, 0.0, -1000000.0).astype(jnp.float32)

    ccol = lax.broadcasted_iota(jnp.int32, (T, S), 1)
    valid = valid_ref[b]                                # scalar from SMEM
    cross_bias = jnp.where(ccol < valid, 0.0, -1000000.0).astype(jnp.float32)

    def attend(q_all, k_all, v_all, bias, wo_ref):
        """q_all (T,H*Dh), k_all/v_all (L,H*Dh) f32; bias (T,L) f32."""
        outs = []
        for h in range(num_heads):                      # static unroll, H small
            sl = slice(h * head_dim, (h + 1) * head_dim)
            q_h = q_all[:, sl].astype(bf16)
            k_h = k_all[:, sl].astype(bf16)
            v_h = v_all[:, sl].astype(bf16)
            # contract last dims of both (no k.T relayout), f32 accumulate
            s = lax.dot_general(q_h, k_h, (((1,), (1,)), ((), ())),
                                preferred_element_type=jnp.float32) * scale
            p = _softmax(s + bias)                      # f32 mask add / softmax
            outs.append(jnp.dot(p.astype(bf16), v_h,
                                preferred_element_type=jnp.float32))
        o = jnp.concatenate(outs, axis=-1)              # (T, H*Dh) f32
        return jnp.dot(o.astype(bf16), wo_ref[...],     # concat @ W_o
                       preferred_element_type=jnp.float32)

    # ---- self attention + AddNorm (fused QKV projection, N = 3*H*Dh) ------
    qkv = jnp.dot(x.astype(bf16), wqkv1_ref[...],
                  preferred_element_type=jnp.float32)   # (T, 3*H*Dh)
    x2 = attend(qkv[:, :HD], qkv[:, HD:2 * HD], qkv[:, 2 * HD:],
                self_bias, wo1_ref)
    y = _layernorm(x + x2, g1_ref[...], be1_ref[...])

    # ---- cross attention + AddNorm (fused K/V projection of enc) ----------
    q2 = jnp.dot(y.astype(bf16), wq2_ref[...],
                 preferred_element_type=jnp.float32)    # (T, H*Dh)
    kv2 = jnp.dot(enc.astype(bf16), wkv2_ref[...],
                  preferred_element_type=jnp.float32)   # (S, 2*H*Dh)
    y2 = attend(q2, kv2[:, :HD], kv2[:, HD:], cross_bias, wo2_ref)
    z = _layernorm(y + y2, g2_ref[...], be2_ref[...])

    # ---- position-wise FFN + AddNorm --------------------------------------
    h1 = jnp.maximum(
        jnp.dot(z.astype(bf16), wf1_ref[...],
                preferred_element_type=jnp.float32) + bf1_ref[...], 0.0)
    ffn = jnp.dot(h1.astype(bf16), wf2_ref[...],
                  preferred_element_type=jnp.float32) + bf2_ref[...]
    out_ref[...] = _layernorm(z + ffn, g3_ref[...], be3_ref[...])
    # NOTE: D=32 (<128 lanes) -> masked output stores; at production D (>=128)
    # stores are lane-dense automatically.  For large T/S, add a query-tile
    # grid axis and stream K/V flash-attention style (tiles sized for v7x's
    # 64 MiB VMEM first).


# ------------------------------- wrappers -----------------------------------

def prepare_params(params, num_heads):
    """One-time weight relayout + bf16 cast, hoisted OUT of the forward path."""
    bf16, f32 = jnp.bfloat16, jnp.float32
    return {
        # self-attention: fused (D, 3*H*Dh) QKV weight -> one lane-dense matmul
        "wqkv1": jnp.concatenate(
            [params["wq1"], params["wk1"], params["wv1"]], axis=1).astype(bf16),
        "wo1": params["wo1"].astype(bf16),
        # cross-attention: q separate, fused (D, 2*H*Dh) K/V weight
        "wq2": params["wq2"].astype(bf16),
        "wkv2": jnp.concatenate(
            [params["wk2"], params["wv2"]], axis=1).astype(bf16),
        "wo2": params["wo2"].astype(bf16),
        # LayerNorm params / biases stay f32 (vector math stays f32 on all gens)
        "g1": params["g1"].astype(f32), "be1": params["be1"].astype(f32),
        "g2": params["g2"].astype(f32), "be2": params["be2"].astype(f32),
        "g3": params["g3"].astype(f32), "be3": params["be3"].astype(f32),
        "wf1": params["wf1"].astype(bf16), "bf1": params["bf1"].astype(f32),
        "wf2": params["wf2"].astype(bf16), "bf2": params["bf2"].astype(f32),
    }


def decoder_block(x, enc_outputs, enc_valid_lens, prepared, num_heads):
    B, T, D = x.shape
    _, S, _ = enc_outputs.shape
    Dh = D                        # d2l quirk: per-head dim == num_hiddens == D
    HD = num_heads * Dh
    F = prepared["wf1"].shape[1]

    weights = [
        prepared["wqkv1"], prepared["wo1"],
        prepared["wq2"], prepared["wkv2"], prepared["wo2"],
        prepared["g1"], prepared["be1"], prepared["g2"], prepared["be2"],
        prepared["g3"], prepared["be3"],
        prepared["wf1"], prepared["bf1"], prepared["wf2"], prepared["bf2"],
    ]

    kernel = functools.partial(decoder_block_kernel, T=T, S=S,
                               num_heads=num_heads, head_dim=Dh)

    # advisory cost estimate (per-batch attention, bf16 weight bytes)
    BT, BS = B * T, B * S
    flops = int(
        2 * BT * D * (3 * HD)                          # self fused qkv proj
        + 2 * B * num_heads * T * T * Dh * 2           # self scores + attn@v
        + 2 * BT * HD * D                              # self output proj
        + 2 * BT * D * HD                              # cross q proj
        + 2 * BS * D * (2 * HD)                        # cross fused k/v proj
        + 2 * B * num_heads * T * S * Dh * 2           # cross scores + attn@v
        + 2 * BT * HD * D                              # cross output proj
        + 2 * BT * D * F * 2                           # FFN
    )
    transcendentals = int(num_heads * B * T * (T + S) + 6 * BT)
    bytes_accessed = int(
        4 * (x.size + enc_outputs.size + B + BT * D)   # f32 acts + lens + out
        + sum(int(w.size) * w.dtype.itemsize for w in weights)
    )

    grid_spec = pltpu.PrefetchScalarGridSpec(
        num_scalar_prefetch=1,                         # enc_valid_lens -> SMEM
        grid=(B,),
        in_specs=[
            pl.BlockSpec((None, T, D), lambda b, vl: (b, 0, 0)),   # x[b]
            pl.BlockSpec((None, S, D), lambda b, vl: (b, 0, 0)),   # enc[b]
        ] + [pl.BlockSpec(w.shape, lambda b, vl: (0, 0)) for w in weights],
        out_specs=pl.BlockSpec((None, T, D), lambda b, vl: (b, 0, 0)),
    )

    out = pl.pallas_call(
        kernel,
        out_shape=jax.ShapeDtypeStruct((B, T, D), jnp.float32),
        grid_spec=grid_spec,
        compiler_params=pltpu.CompilerParams(
            # batch axis parallel -> shards across the two TensorCores on v7x
            dimension_semantics=("parallel",),
            # sized for v7x's 64 MiB physical VMEM (<=48 MiB target)
            vmem_limit_bytes=32 * 1024 * 1024),
        cost_estimate=pl.CostEstimate(flops=flops,
                                      transcendentals=transcendentals,
                                      bytes_accessed=bytes_accessed),
    )(enc_valid_lens.astype(jnp.int32), x, enc_outputs, *weights)

    return out


# --------------------------- pure-JAX references ----------------------------

def reference(x, enc, enc_valid_lens, p, num_heads, mxu_bf16=False):
    """mxu_bf16=False: module-spec f32 forward.
       mxu_bf16=True : same math with matmul operands cast to bf16 (mirrors the
       kernel's MXU dtype), f32 accumulation / softmax / LayerNorm."""
    B, T, D = x.shape
    Dh = D

    def mm(a, b):
        if mxu_bf16:
            a, b = a.astype(jnp.bfloat16), b.astype(jnp.bfloat16)
        return jnp.matmul(a, b, preferred_element_type=jnp.float32)

    def ein(eq, a, b):
        if mxu_bf16:
            a, b = a.astype(jnp.bfloat16), b.astype(jnp.bfloat16)
        return jnp.einsum(eq, a, b, preferred_element_type=jnp.float32)

    def mha(q_in, kv_in, wq, wk, wv, wo, valid_per_row):
        q, k, v = mm(q_in, wq), mm(kv_in, wk), mm(kv_in, wv)

        def split(a):
            return a.reshape(a.shape[0], a.shape[1], num_heads, Dh).transpose(0, 2, 1, 3)

        qh, kh, vh = split(q), split(k), split(v)
        scores = ein("bhqd,bhkd->bhqk", qh, kh) / math.sqrt(Dh)
        col = jnp.arange(kh.shape[2])
        mask = col[None, None, None, :] < valid_per_row[:, None, :, None]
        scores = jnp.where(mask, scores, -1000000.0)
        attn = jax.nn.softmax(scores, axis=-1)
        o = ein("bhqk,bhkd->bhqd", attn, vh)
        o = o.transpose(0, 2, 1, 3).reshape(B, -1, num_heads * Dh)
        return mm(o, wo)

    def ln(a, g, be):
        mu = a.mean(-1, keepdims=True)
        var = ((a - mu) ** 2).mean(-1, keepdims=True)
        return (a - mu) / jnp.sqrt(var + 1e-5) * g + be

    dec_valid = jnp.broadcast_to(jnp.arange(1, T + 1)[None, :], (B, T))
    x2 = mha(x, x, p["wq1"], p["wk1"], p["wv1"], p["wo1"], dec_valid)
    y = ln(x + x2, p["g1"], p["be1"])
    enc_valid_rows = jnp.broadcast_to(enc_valid_lens[:, None], (B, T))
    y2 = mha(y, enc, p["wq2"], p["wk2"], p["wv2"], p["wo2"], enc_valid_rows)
    z = ln(y + y2, p["g2"], p["be2"])
    h = jax.nn.relu(mm(z, p["wf1"]) + p["bf1"])
    ffn = mm(h, p["wf2"]) + p["bf2"]
    return ln(z + ffn, p["g3"], p["be3"])


# --------------------------------- main -------------------------------------

if __name__ == "__main__":
    B, T, S = 2, 8, 8
    D = 32           # num_hiddens == key/query/value size == norm_shape
    H = 2            # num_heads -> per-head dim = D (d2l quirk)
    F = 64           # ffn_num_hiddens

    key = jax.random.PRNGKey(0)
    ks = jax.random.split(key, 16)

    def w(k, shape, scale=0.1):
        return (scale * jax.random.normal(k, shape)).astype(jnp.float32)

    params = {
        "wq1": w(ks[0], (D, H * D)), "wk1": w(ks[1], (D, H * D)),
        "wv1": w(ks[2], (D, H * D)), "wo1": w(ks[3], (H * D, D)),
        "wq2": w(ks[4], (D, H * D)), "wk2": w(ks[5], (D, H * D)),
        "wv2": w(ks[6], (D, H * D)), "wo2": w(ks[7], (H * D, D)),
        "g1": jnp.ones((1, D), jnp.float32), "be1": jnp.zeros((1, D), jnp.float32),
        "g2": jnp.ones((1, D), jnp.float32), "be2": jnp.zeros((1, D), jnp.float32),
        "g3": jnp.ones((1, D), jnp.float32), "be3": jnp.zeros((1, D), jnp.float32),
        "wf1": w(ks[8], (D, F)), "bf1": w(ks[9], (1, F)),
        "wf2": w(ks[10], (F, D)), "bf2": w(ks[11], (1, D)),
    }

    x = jax.random.normal(ks[12], (B, T, D), jnp.float32)
    enc_outputs = jax.random.normal(ks[13], (B, S, D), jnp.float32)
    enc_valid_lens = jnp.array([8, 5], dtype=jnp.int32)

    # TODO(synk): nn.Dropout is stochastic; treated as identity (p=0). The
    # KV-cache concat (state[2][i]) is decode-time glue; this kernel implements
    # the state[2][i] is None path (key_values == X).

    prepared = prepare_params(params, num_heads=H)   # one-time, out of fwd path
    out = decoder_block(x, enc_outputs, enc_valid_lens, prepared, num_heads=H)
    out = jax.block_until_ready(out)
    assert out.shape == (B, T, D)

    # Tight check: same-math reference with bf16 MXU operands (covers masking /
    # softmax / LayerNorm logic; slack only for approx reciprocal + reorder).
    ref_bf16 = reference(x, enc_outputs, enc_valid_lens, params, H, mxu_bf16=True)
    assert jnp.allclose(out, ref_bf16, rtol=5e-3, atol=5e-3), \
        float(jnp.max(jnp.abs(out - ref_bf16)))

    # Sanity check against the module-spec f32 forward (slack for bf16 MXU).
    ref_f32 = reference(x, enc_outputs, enc_valid_lens, params, H, mxu_bf16=False)
    assert jnp.allclose(out, ref_f32, rtol=1e-1, atol=1e-1), \
        float(jnp.max(jnp.abs(out - ref_f32)))

    print("KERNEL_OK")
</pallas_src>

<mosaic_0001>
module attributes {stable_mosaic.version = 11 : i64} {
  func.func @decoder_block_kernel(%arg0: i32, %arg1: memref<2xi32, #tpu.memory_space<smem>>, %arg2: memref<1x8x32xf32, #tpu.memory_space<vmem>>, %arg3: memref<1x8x32xf32, #tpu.memory_space<vmem>>, %arg4: memref<32x192xbf16, #tpu.memory_space<vmem>>, %arg5: memref<64x32xbf16, #tpu.memory_space<vmem>>, %arg6: memref<32x64xbf16, #tpu.memory_space<vmem>>, %arg7: memref<32x128xbf16, #tpu.memory_space<vmem>>, %arg8: memref<64x32xbf16, #tpu.memory_space<vmem>>, %arg9: memref<1x32xf32, #tpu.memory_space<vmem>>, %arg10: memref<1x32xf32, #tpu.memory_space<vmem>>, %arg11: memref<1x32xf32, #tpu.memory_space<vmem>>, %arg12: memref<1x32xf32, #tpu.memory_space<vmem>>, %arg13: memref<1x32xf32, #tpu.memory_space<vmem>>, %arg14: memref<1x32xf32, #tpu.memory_space<vmem>>, %arg15: memref<32x64xbf16, #tpu.memory_space<vmem>>, %arg16: memref<1x64xf32, #tpu.memory_space<vmem>>, %arg17: memref<64x32xbf16, #tpu.memory_space<vmem>>, %arg18: memref<1x32xf32, #tpu.memory_space<vmem>>, %arg19: memref<1x8x32xf32, #tpu.memory_space<vmem>>) attributes {dimension_semantics = [#tpu.dimension_semantics<parallel>], iteration_bounds = array<i64: 2>, scalar_prefetch = 1 : i64, scratch_operands = 0 : i64, tpu.core_type = #tpu.core_type<tc>, window_params = [{transform_indices = @transform_0, window_bounds = array<i64: 1, 8, 32>}, {transform_indices = @transform_1, window_bounds = array<i64: 1, 8, 32>}, {pipeline_mode = #tpu.pipeline_mode<synchronous>, transform_indices = @transform_2, window_bounds = array<i64: 32, 192>}, {pipeline_mode = #tpu.pipeline_mode<synchronous>, transform_indices = @transform_3, window_bounds = array<i64: 64, 32>}, {pipeline_mode = #tpu.pipeline_mode<synchronous>, transform_indices = @transform_4, window_bounds = array<i64: 32, 64>}, {pipeline_mode = #tpu.pipeline_mode<synchronous>, transform_indices = @transform_5, window_bounds = array<i64: 32, 128>}, {pipeline_mode = #tpu.pipeline_mode<synchronous>, transform_indices = @transform_6, window_bounds = array<i64: 64, 32>}, {pipeline_mode = #tpu.pipeline_mode<synchronous>, transform_indices = @transform_7, window_bounds = array<i64: 1, 32>}, {pipeline_mode = #tpu.pipeline_mode<synchronous>, transform_indices = @transform_8, window_bounds = array<i64: 1, 32>}, {pipeline_mode = #tpu.pipeline_mode<synchronous>, transform_indices = @transform_9, window_bounds = array<i64: 1, 32>}, {pipeline_mode = #tpu.pipeline_mode<synchronous>, transform_indices = @transform_10, window_bounds = array<i64: 1, 32>}, {pipeline_mode = #tpu.pipeline_mode<synchronous>, transform_indices = @transform_11, window_bounds = array<i64: 1, 32>}, {pipeline_mode = #tpu.pipeline_mode<synchronous>, transform_indices = @transform_12, window_bounds = array<i64: 1, 32>}, {pipeline_mode = #tpu.pipeline_mode<synchronous>, transform_indices = @transform_13, window_bounds = array<i64: 32, 64>}, {pipeline_mode = #tpu.pipeline_mode<synchronous>, transform_indices = @transform_14, window_bounds = array<i64: 1, 64>}, {pipeline_mode = #tpu.pipeline_mode<synchronous>, transform_indices = @transform_15, window_bounds = array<i64: 64, 32>}, {pipeline_mode = #tpu.pipeline_mode<synchronous>, transform_indices = @transform_16, window_bounds = array<i64: 1, 32>}, {transform_indices = @transform_17, window_bounds = array<i64: 1, 8, 32>}]} {
    %c0 = arith.constant 0 : index
    %c0_0 = arith.constant 0 : index
    %c0_1 = arith.constant 0 : index
    %0 = vector.load %arg2[%c0, %c0_0, %c0_1] : memref<1x8x32xf32, #tpu.memory_space<vmem>>, vector<1x8x32xf32>
    %1 = vector.shape_cast %0 : vector<1x8x32xf32> to vector<8x32xf32>
    %c0_2 = arith.constant 0 : index
    %c0_3 = arith.constant 0 : index
    %c0_4 = arith.constant 0 : index
    %2 = vector.load %arg3[%c0_2, %c0_3, %c0_4] : memref<1x8x32xf32, #tpu.memory_space<vmem>>, vector<1x8x32xf32>
    %3 = vector.shape_cast %2 : vector<1x8x32xf32> to vector<8x32xf32>
    %4 = tpu.iota {dimensions = array<i32: 0>} : vector<8x8xi32>
    %5 = tpu.iota {dimensions = array<i32: 1>} : vector<8x8xi32>
    %6 = arith.cmpi sle, %5, %4 : vector<8x8xi32>
    %cst = arith.constant 0.000000e+00 : f32
    %cst_5 = arith.constant -1.000000e+06 : f32
    %7 = vector.broadcast %cst : f32 to vector<8x8xf32>
    %8 = vector.broadcast %cst_5 : f32 to vector<8x8xf32>
    %9 = arith.select %6, %7, %8 : vector<8x8xi1>, vector<8x8xf32>
    %10 = tpu.iota {dimensions = array<i32: 1>} : vector<8x8xi32>
    %11 = arith.index_cast %arg0 : i32 to index
    %12 = memref.load %arg1[%11] : memref<2xi32, #tpu.memory_space<smem>>
    %13 = vector.broadcast %12 : i32 to vector<8x8xi32>
    %14 = arith.cmpi slt, %10, %13 : vector<8x8xi32>
    %cst_6 = arith.constant 0.000000e+00 : f32
    %cst_7 = arith.constant -1.000000e+06 : f32
    %15 = vector.broadcast %cst_6 : f32 to vector<8x8xf32>
    %16 = vector.broadcast %cst_7 : f32 to vector<8x8xf32>
    %17 = arith.select %14, %15, %16 : vector<8x8xi1>, vector<8x8xf32>
    %18 = arith.truncf %1 : vector<8x32xf32> to vector<8x32xbf16>
    %c0_8 = arith.constant 0 : index
    %c0_9 = arith.constant 0 : index
    %19 = vector.load %arg4[%c0_8, %c0_9] : memref<32x192xbf16, #tpu.memory_space<vmem>>, vector<32x192xbf16>
    %cst_10 = arith.constant dense<0.000000e+00> : vector<8x192xf32>
    %20 = tpu.matmul %18, %19, %cst_10 {dimension_numbers = #tpu.dot_dimension_numbers<[1], [0], [0], [1], [0, 0, 1, 1], [], []>} : vector<8x32xbf16>, vector<32x192xbf16>, vector<8x192xf32> -> vector<8x192xf32>
    %21 = vector.extract_strided_slice %20 {offsets = [0, 0], sizes = [8, 64], strides = [1, 1]} : vector<8x192xf32> to vector<8x64xf32>
    %22 = vector.extract_strided_slice %20 {offsets = [0, 64], sizes = [8, 64], strides = [1, 1]} : vector<8x192xf32> to vector<8x64xf32>
    %23 = vector.extract_strided_slice %20 {offsets = [0, 128], sizes = [8, 64], strides = [1, 1]} : vector<8x192xf32> to vector<8x64xf32>
    %24 = vector.extract_strided_slice %21 {offsets = [0, 0], sizes = [8, 32], strides = [1, 1]} : vector<8x64xf32> to vector<8x32xf32>
    %25 = arith.truncf %24 : vector<8x32xf32> to vector<8x32xbf16>
    %26 = vector.extract_strided_slice %22 {offsets = [0, 0], sizes = [8, 32], strides = [1, 1]} : vector<8x64xf32> to vector<8x32xf32>
    %27 = arith.truncf %26 : vector<8x32xf32> to vector<8x32xbf16>
    %28 = vector.extract_strided_slice %23 {offsets = [0, 0], sizes = [8, 32], strides = [1, 1]} : vector<8x64xf32> to vector<8x32xf32>
    %29 = arith.truncf %28 : vector<8x32xf32> to vector<8x32xbf16>
    %cst_11 = arith.constant dense<0.000000e+00> : vector<8x8xf32>
    %30 = tpu.matmul %25, %27, %cst_11 {dimension_numbers = #tpu.dot_dimension_numbers<[1], [1], [0], [0], [0, 0, 1, 0], [], []>} : vector<8x32xbf16>, vector<8x32xbf16>, vector<8x8xf32> -> vector<8x8xf32>
    %cst_12 = arith.constant 0.176776692 : f32
    %31 = vector.broadcast %cst_12 : f32 to vector<8x8xf32>
    %32 = arith.mulf %30, %31 : vector<8x8xf32>
    %33 = arith.addf %32, %9 : vector<8x8xf32>
    %cst_13 = arith.constant dense<0xFF800000> : vector<8xf32>
    %34 = vector.multi_reduction <maximumf>, %33, %cst_13 [1] : vector<8x8xf32> to vector<8xf32>
    %35 = vector.shape_cast %34 : vector<8xf32> to vector<8x1xf32>
    %36 = vector.broadcast %35 : vector<8x1xf32> to vector<8x8xf32>
    %37 = arith.subf %33, %36 : vector<8x8xf32>
    %38 = math.exp %37 : vector<8x8xf32>
    %cst_14 = arith.constant dense<0.000000e+00> : vector<8xf32>
    %39 = vector.multi_reduction <add>, %38, %cst_14 [1] : vector<8x8xf32> to vector<8xf32>
    %40 = vector.shape_cast %39 : vector<8xf32> to vector<8x1xf32>
    %41 = tpu.reciprocal %40 {approx = true} : vector<8x1xf32> -> vector<8x1xf32>
    %42 = vector.broadcast %41 : vector<8x1xf32> to vector<8x8xf32>
    %43 = arith.mulf %38, %42 : vector<8x8xf32>
    %44 = arith.truncf %43 : vector<8x8xf32> to vector<8x8xbf16>
    %cst_15 = arith.constant dense<0.000000e+00> : vector<8x32xf32>
    %45 = tpu.matmul %44, %29, %cst_15 {dimension_numbers = #tpu.dot_dimension_numbers<[1], [0], [0], [1], [0, 0, 1, 1], [], []>} : vector<8x8xbf16>, vector<8x32xbf16>, vector<8x32xf32> -> vector<8x32xf32>
    %46 = vector.extract_strided_slice %21 {offsets = [0, 32], sizes = [8, 32], strides = [1, 1]} : vector<8x64xf32> to vector<8x32xf32>
    %47 = arith.truncf %46 : vector<8x32xf32> to vector<8x32xbf16>
    %48 = vector.extract_strided_slice %22 {offsets = [0, 32], sizes = [8, 32], strides = [1, 1]} : vector<8x64xf32> to vector<8x32xf32>
    %49 = arith.truncf %48 : vector<8x32xf32> to vector<8x32xbf16>
    %50 = vector.extract_strided_slice %23 {offsets = [0, 32], sizes = [8, 32], strides = [1, 1]} : vector<8x64xf32> to vector<8x32xf32>
    %51 = arith.truncf %50 : vector<8x32xf32> to vector<8x32xbf16>
    %cst_16 = arith.constant dense<0.000000e+00> : vector<8x8xf32>
    %52 = tpu.matmul %47, %49, %cst_16 {dimension_numbers = #tpu.dot_dimension_numbers<[1], [1], [0], [0], [0, 0, 1, 0], [], []>} : vector<8x32xbf16>, vector<8x32xbf16>, vector<8x8xf32> -> vector<8x8xf32>
    %cst_17 = arith.constant 0.176776692 : f32
    %53 = vector.broadcast %cst_17 : f32 to vector<8x8xf32>
    %54 = arith.mulf %52, %53 : vector<8x8xf32>
    %55 = arith.addf %54, %9 : vector<8x8xf32>
    %cst_18 = arith.constant dense<0xFF800000> : vector<8xf32>
    %56 = vector.multi_reduction <maximumf>, %55, %cst_18 [1] : vector<8x8xf32> to vector<8xf32>
    %57 = vector.shape_cast %56 : vector<8xf32> to vector<8x1xf32>
    %58 = vector.broadcast %57 : vector<8x1xf32> to vector<8x8xf32>
    %59 = arith.subf %55, %58 : vector<8x8xf32>
    %60 = math.exp %59 : vector<8x8xf32>
    %cst_19 = arith.constant dense<0.000000e+00> : vector<8xf32>
    %61 = vector.multi_reduction <add>, %60, %cst_19 [1] : vector<8x8xf32> to vector<8xf32>
    %62 = vector.shape_cast %61 : vector<8xf32> to vector<8x1xf32>
    %63 = tpu.reciprocal %62 {approx = true} : vector<8x1xf32> -> vector<8x1xf32>
    %64 = vector.broadcast %63 : vector<8x1xf32> to vector<8x8xf32>
    %65 = arith.mulf %60, %64 : vector<8x8xf32>
    %66 = arith.truncf %65 : vector<8x8xf32> to vector<8x8xbf16>
    %cst_20 = arith.constant dense<0.000000e+00> : vector<8x32xf32>
    %67 = tpu.matmul %66, %51, %cst_20 {dimension_numbers = #tpu.dot_dimension_numbers<[1], [0], [0], [1], [0, 0, 1, 1], [], []>} : vector<8x8xbf16>, vector<8x32xbf16>, vector<8x32xf32> -> vector<8x32xf32>
    %68 = tpu.concatenate %45, %67 in 1 : vector<8x32xf32>, vector<8x32xf32> -> vector<8x64xf32>
    %69 = arith.truncf %68 : vector<8x64xf32> to vector<8x64xbf16>
    %c0_21 = arith.constant 0 : index
    %c0_22 = arith.constant 0 : index
    %70 = vector.load %arg5[%c0_21, %c0_22] : memref<64x32xbf16, #tpu.memory_space<vmem>>, vector<64x32xbf16>
    %cst_23 = arith.constant dense<0.000000e+00> : vector<8x32xf32>
    %71 = tpu.matmul %69, %70, %cst_23 {dimension_numbers = #tpu.dot_dimension_numbers<[1], [0], [0], [1], [0, 0, 1, 1], [], []>} : vector<8x64xbf16>, vector<64x32xbf16>, vector<8x32xf32> -> vector<8x32xf32>
    %72 = arith.addf %1, %71 : vector<8x32xf32>
    %c0_24 = arith.constant 0 : index
    %c0_25 = arith.constant 0 : index
    %73 = vector.load %arg9[%c0_24, %c0_25] : memref<1x32xf32, #tpu.memory_space<vmem>>, vector<1x32xf32>
    %c0_26 = arith.constant 0 : index
    %c0_27 = arith.constant 0 : index
    %74 = vector.load %arg10[%c0_26, %c0_27] : memref<1x32xf32, #tpu.memory_space<vmem>>, vector<1x32xf32>
    %cst_28 = arith.constant dense<0.000000e+00> : vector<8xf32>
    %75 = vector.multi_reduction <add>, %72, %cst_28 [1] : vector<8x32xf32> to vector<8xf32>
    %76 = vector.shape_cast %75 : vector<8xf32> to vector<8x1xf32>
    %cst_29 = arith.constant 3.200000e+01 : f32
    %77 = vector.broadcast %cst_29 : f32 to vector<8x1xf32>
    %78 = arith.divf %76, %77 : vector<8x1xf32>
    %79 = vector.broadcast %78 : vector<8x1xf32> to vector<8x32xf32>
    %80 = arith.subf %72, %79 : vector<8x32xf32>
    %81 = arith.mulf %80, %80 : vector<8x32xf32>
    %cst_30 = arith.constant dense<0.000000e+00> : vector<8xf32>
    %82 = vector.multi_reduction <add>, %81, %cst_30 [1] : vector<8x32xf32> to vector<8xf32>
    %83 = vector.shape_cast %82 : vector<8xf32> to vector<8x1xf32>
    %cst_31 = arith.constant 3.200000e+01 : f32
    %84 = vector.broadcast %cst_31 : f32 to vector<8x1xf32>
    %85 = arith.divf %83, %84 : vector<8x1xf32>
    %86 = vector.broadcast %78 : vector<8x1xf32> to vector<8x32xf32>
    %87 = arith.subf %72, %86 : vector<8x32xf32>
    %cst_32 = arith.constant 9.99999974E-6 : f32
    %88 = vector.broadcast %cst_32 : f32 to vector<8x1xf32>
    %89 = arith.addf %85, %88 : vector<8x1xf32>
    %90 = math.rsqrt %89 : vector<8x1xf32>
    %91 = vector.broadcast %90 : vector<8x1xf32> to vector<8x32xf32>
    %92 = arith.mulf %87, %91 : vector<8x32xf32>
    %93 = vector.broadcast %73 : vector<1x32xf32> to vector<8x32xf32>
    %94 = arith.mulf %92, %93 : vector<8x32xf32>
    %95 = vector.broadcast %74 : vector<1x32xf32> to vector<8x32xf32>
    %96 = arith.addf %94, %95 : vector<8x32xf32>
    %97 = arith.truncf %96 : vector<8x32xf32> to vector<8x32xbf16>
    %c0_33 = arith.constant 0 : index
    %c0_34 = arith.constant 0 : index
    %98 = vector.load %arg6[%c0_33, %c0_34] : memref<32x64xbf16, #tpu.memory_space<vmem>>, vector<32x64xbf16>
    %cst_35 = arith.constant dense<0.000000e+00> : vector<8x64xf32>
    %99 = tpu.matmul %97, %98, %cst_35 {dimension_numbers = #tpu.dot_dimension_numbers<[1], [0], [0], [1], [0, 0, 1, 1], [], []>} : vector<8x32xbf16>, vector<32x64xbf16>, vector<8x64xf32> -> vector<8x64xf32>
    %100 = arith.truncf %3 : vector<8x32xf32> to vector<8x32xbf16>
    %c0_36 = arith.constant 0 : index
    %c0_37 = arith.constant 0 : index
    %101 = vector.load %arg7[%c0_36, %c0_37] : memref<32x128xbf16, #tpu.memory_space<vmem>>, vector<32x128xbf16>
    %cst_38 = arith.constant dense<0.000000e+00> : vector<8x128xf32>
    %102 = tpu.matmul %100, %101, %cst_38 {dimension_numbers = #tpu.dot_dimension_numbers<[1], [0], [0], [1], [0, 0, 1, 1], [], []>} : vector<8x32xbf16>, vector<32x128xbf16>, vector<8x128xf32> -> vector<8x128xf32>
    %103 = vector.extract_strided_slice %102 {offsets = [0, 0], sizes = [8, 64], strides = [1, 1]} : vector<8x128xf32> to vector<8x64xf32>
    %104 = vector.extract_strided_slice %102 {offsets = [0, 64], sizes = [8, 64], strides = [1, 1]} : vector<8x128xf32> to vector<8x64xf32>
    %105 = vector.extract_strided_slice %99 {offsets = [0, 0], sizes = [8, 32], strides = [1, 1]} : vector<8x64xf32> to vector<8x32xf32>
    %106 = arith.truncf %105 : vector<8x32xf32> to vector<8x32xbf16>
    %107 = vector.extract_strided_slice %103 {offsets = [0, 0], sizes = [8, 32], strides = [1, 1]} : vector<8x64xf32> to vector<8x32xf32>
    %108 = arith.truncf %107 : vector<8x32xf32> to vector<8x32xbf16>
    %109 = vector.extract_strided_slice %104 {offsets = [0, 0], sizes = [8, 32], strides = [1, 1]} : vector<8x64xf32> to vector<8x32xf32>
    %110 = arith.truncf %109 : vector<8x32xf32> to vector<8x32xbf16>
    %cst_39 = arith.constant dense<0.000000e+00> : vector<8x8xf32>
    %111 = tpu.matmul %106, %108, %cst_39 {dimension_numbers = #tpu.dot_dimension_numbers<[1], [1], [0], [0], [0, 0, 1, 0], [], []>} : vector<8x32xbf16>, vector<8x32xbf16>, vector<8x8xf32> -> vector<8x8xf32>
    %cst_40 = arith.constant 0.176776692 : f32
    %112 = vector.broadcast %cst_40 : f32 to vector<8x8xf32>
    %113 = arith.mulf %111, %112 : vector<8x8xf32>
    %114 = arith.addf %113, %17 : vector<8x8xf32>
    %cst_41 = arith.constant dense<0xFF800000> : vector<8xf32>
    %115 = vector.multi_reduction <maximumf>, %114, %cst_41 [1] : vector<8x8xf32> to vector<8xf32>
    %116 = vector.shape_cast %115 : vector<8xf32> to vector<8x1xf32>
    %117 = vector.broadcast %116 : vector<8x1xf32> to vector<8x8xf32>
    %118 = arith.subf %114, %117 : vector<8x8xf32>
    %119 = math.exp %118 : vector<8x8xf32>
    %cst_42 = arith.constant dense<0.000000e+00> : vector<8xf32>
    %120 = vector.multi_reduction <add>, %119, %cst_42 [1] : vector<8x8xf32> to vector<8xf32>
    %121 = vector.shape_cast %120 : vector<8xf32> to vector<8x1xf32>
    %122 = tpu.reciprocal %121 {approx = true} : vector<8x1xf32> -> vector<8x1xf32>
    %123 = vector.broadcast %122 : vector<8x1xf32> to vector<8x8xf32>
    %124 = arith.mulf %119, %123 : vector<8x8xf32>
    %125 = arith.truncf %124 : vector<8x8xf32> to vector<8x8xbf16>
    %cst_43 = arith.constant dense<0.000000e+00> : vector<8x32xf32>
    %126 = tpu.matmul %125, %110, %cst_43 {dimension_numbers = #tpu.dot_dimension_numbers<[1], [0], [0], [1], [0, 0, 1, 1], [], []>} : vector<8x8xbf16>, vector<8x32xbf16>, vector<8x32xf32> -> vector<8x32xf32>
    %127 = vector.extract_strided_slice %99 {offsets = [0, 32], sizes = [8, 32], strides = [1, 1]} : vector<8x64xf32> to vector<8x32xf32>
    %128 = arith.truncf %127 : vector<8x32xf32> to vector<8x32xbf16>
    %129 = vector.extract_strided_slice %103 {offsets = [0, 32], sizes = [8, 32], strides = [1, 1]} : vector<8x64xf32> to vector<8x32xf32>
    %130 = arith.truncf %129 : vector<8x32xf32> to vector<8x32xbf16>
    %131 = vector.extract_strided_slice %104 {offsets = [0, 32], sizes = [8, 32], strides = [1, 1]} : vector<8x64xf32> to vector<8x32xf32>
    %132 = arith.truncf %131 : vector<8x32xf32> to vector<8x32xbf16>
    %cst_44 = arith.constant dense<0.000000e+00> : vector<8x8xf32>
    %133 = tpu.matmul %128, %130, %cst_44 {dimension_numbers = #tpu.dot_dimension_numbers<[1], [1], [0], [0], [0, 0, 1, 0], [], []>} : vector<8x32xbf16>, vector<8x32xbf16>, vector<8x8xf32> -> vector<8x8xf32>
    %cst_45 = arith.constant 0.176776692 : f32
    %134 = vector.broadcast %cst_45 : f32 to vector<8x8xf32>
    %135 = arith.mulf %133, %134 : vector<8x8xf32>
    %136 = arith.addf %135, %17 : vector<8x8xf32>
    %cst_46 = arith.constant dense<0xFF800000> : vector<8xf32>
    %137 = vector.multi_reduction <maximumf>, %136, %cst_46 [1] : vector<8x8xf32> to vector<8xf32>
    %138 = vector.shape_cast %137 : vector<8xf32> to vector<8x1xf32>
    %139 = vector.broadcast %138 : vector<8x1xf32> to vector<8x8xf32>
    %140 = arith.subf %136, %139 : vector<8x8xf32>
    %141 = math.exp %140 : vector<8x8xf32>
    %cst_47 = arith.constant dense<0.000000e+00> : vector<8xf32>
    %142 = vector.multi_reduction <add>, %141, %cst_47 [1] : vector<8x8xf32> to vector<8xf32>
    %143 = vector.shape_cast %142 : vector<8xf32> to vector<8x1xf32>
    %144 = tpu.reciprocal %143 {approx = true} : vector<8x1xf32> -> vector<8x1xf32>
    %145 = vector.broadcast %144 : vector<8x1xf32> to vector<8x8xf32>
    %146 = arith.mulf %141, %145 : vector<8x8xf32>
    %147 = arith.truncf %146 : vector<8x8xf32> to vector<8x8xbf16>
    %cst_48 = arith.constant dense<0.000000e+00> : vector<8x32xf32>
    %148 = tpu.matmul %147, %132, %cst_48 {dimension_numbers = #tpu.dot_dimension_numbers<[1], [0], [0], [1], [0, 0, 1, 1], [], []>} : vector<8x8xbf16>, vector<8x32xbf16>, vector<8x32xf32> -> vector<8x32xf32>
    %149 = tpu.concatenate %126, %148 in 1 : vector<8x32xf32>, vector<8x32xf32> -> vector<8x64xf32>
    %150 = arith.truncf %149 : vector<8x64xf32> to vector<8x64xbf16>
    %c0_49 = arith.constant 0 : index
    %c0_50 = arith.constant 0 : index
    %151 = vector.load %arg8[%c0_49, %c0_50] : memref<64x32xbf16, #tpu.memory_space<vmem>>, vector<64x32xbf16>
    %cst_51 = arith.constant dense<0.000000e+00> : vector<8x32xf32>
    %152 = tpu.matmul %150, %151, %cst_51 {dimension_numbers = #tpu.dot_dimension_numbers<[1], [0], [0], [1], [0, 0, 1, 1], [], []>} : vector<8x64xbf16>, vector<64x32xbf16>, vector<8x32xf32> -> vector<8x32xf32>
    %153 = arith.addf %96, %152 : vector<8x32xf32>
    %c0_52 = arith.constant 0 : index
    %c0_53 = arith.constant 0 : index
    %154 = vector.load %arg11[%c0_52, %c0_53] : memref<1x32xf32, #tpu.memory_space<vmem>>, vector<1x32xf32>
    %c0_54 = arith.constant 0 : index
    %c0_55 = arith.constant 0 : index
    %155 = vector.load %arg12[%c0_54, %c0_55] : memref<1x32xf32, #tpu.memory_space<vmem>>, vector<1x32xf32>
    %cst_56 = arith.constant dense<0.000000e+00> : vector<8xf32>
    %156 = vector.multi_reduction <add>, %153, %cst_56 [1] : vector<8x32xf32> to vector<8xf32>
    %157 = vector.shape_cast %156 : vector<8xf32> to vector<8x1xf32>
    %cst_57 = arith.constant 3.200000e+01 : f32
    %158 = vector.broadcast %cst_57 : f32 to vector<8x1xf32>
    %159 = arith.divf %157, %158 : vector<8x1xf32>
    %160 = vector.broadcast %159 : vector<8x1xf32> to vector<8x32xf32>
    %161 = arith.subf %153, %160 : vector<8x32xf32>
    %162 = arith.mulf %161, %161 : vector<8x32xf32>
    %cst_58 = arith.constant dense<0.000000e+00> : vector<8xf32>
    %163 = vector.multi_reduction <add>, %162, %cst_58 [1] : vector<8x32xf32> to vector<8xf32>
    %164 = vector.shape_cast %163 : vector<8xf32> to vector<8x1xf32>
    %cst_59 = arith.constant 3.200000e+01 : f32
    %165 = vector.broadcast %cst_59 : f32 to vector<8x1xf32>
    %166 = arith.divf %164, %165 : vector<8x1xf32>
    %167 = vector.broadcast %159 : vector<8x1xf32> to vector<8x32xf32>
    %168 = arith.subf %153, %167 : vector<8x32xf32>
    %cst_60 = arith.constant 9.99999974E-6 : f32
    %169 = vector.broadcast %cst_60 : f32 to vector<8x1xf32>
    %170 = arith.addf %166, %169 : vector<8x1xf32>
    %171 = math.rsqrt %170 : vector<8x1xf32>
    %172 = vector.broadcast %171 : vector<8x1xf32> to vector<8x32xf32>
    %173 = arith.mulf %168, %172 : vector<8x32xf32>
    %174 = vector.broadcast %154 : vector<1x32xf32> to vector<8x32xf32>
    %175 = arith.mulf %173, %174 : vector<8x32xf32>
    %176 = vector.broadcast %155 : vector<1x32xf32> to vector<8x32xf32>
    %177 = arith.addf %175, %176 : vector<8x32xf32>
    %178 = arith.truncf %177 : vector<8x32xf32> to vector<8x32xbf16>
    %c0_61 = arith.constant 0 : index
    %c0_62 = arith.constant 0 : index
    %179 = vector.load %arg15[%c0_61, %c0_62] : memref<32x64xbf16, #tpu.memory_space<vmem>>, vector<32x64xbf16>
    %cst_63 = arith.constant dense<0.000000e+00> : vector<8x64xf32>
    %180 = tpu.matmul %178, %179, %cst_63 {dimension_numbers = #tpu.dot_dimension_numbers<[1], [0], [0], [1], [0, 0, 1, 1], [], []>} : vector<8x32xbf16>, vector<32x64xbf16>, vector<8x64xf32> -> vector<8x64xf32>
    %c0_64 = arith.constant 0 : index
    %c0_65 = arith.constant 0 : index
    %181 = vector.load %arg16[%c0_64, %c0_65] : memref<1x64xf32, #tpu.memory_space<vmem>>, vector<1x64xf32>
    %182 = vector.broadcast %181 : vector<1x64xf32> to vector<8x64xf32>
    %183 = arith.addf %180, %182 : vector<8x64xf32>
    %cst_66 = arith.constant 0.000000e+00 : f32
    %184 = vector.broadcast %cst_66 : f32 to vector<8x64xf32>
    %185 = arith.maximumf %183, %184 : vector<8x64xf32>
    %186 = arith.truncf %185 : vector<8x64xf32> to vector<8x64xbf16>
    %c0_67 = arith.constant 0 : index
    %c0_68 = arith.constant 0 : index
    %187 = vector.load %arg17[%c0_67, %c0_68] : memref<64x32xbf16, #tpu.memory_space<vmem>>, vector<64x32xbf16>
    %cst_69 = arith.constant dense<0.000000e+00> : vector<8x32xf32>
    %188 = tpu.matmul %186, %187, %cst_69 {dimension_numbers = #tpu.dot_dimension_numbers<[1], [0], [0], [1], [0, 0, 1, 1], [], []>} : vector<8x64xbf16>, vector<64x32xbf16>, vector<8x32xf32> -> vector<8x32xf32>
    %c0_70 = arith.constant 0 : index
    %c0_71 = arith.constant 0 : index
    %189 = vector.load %arg18[%c0_70, %c0_71] : memref<1x32xf32, #tpu.memory_space<vmem>>, vector<1x32xf32>
    %190 = vector.broadcast %189 : vector<1x32xf32> to vector<8x32xf32>
    %191 = arith.addf %188, %190 : vector<8x32xf32>
    %192 = arith.addf %177, %191 : vector<8x32xf32>
    %c0_72 = arith.constant 0 : index
    %c0_73 = arith.constant 0 : index
    %193 = vector.load %arg13[%c0_72, %c0_73] : memref<1x32xf32, #tpu.memory_space<vmem>>, vector<1x32xf32>
    %c0_74 = arith.constant 0 : index
    %c0_75 = arith.constant 0 : index
    %194 = vector.load %arg14[%c0_74, %c0_75] : memref<1x32xf32, #tpu.memory_space<vmem>>, vector<1x32xf32>
    %cst_76 = arith.constant dense<0.000000e+00> : vector<8xf32>
    %195 = vector.multi_reduction <add>, %192, %cst_76 [1] : vector<8x32xf32> to vector<8xf32>
    %196 = vector.shape_cast %195 : vector<8xf32> to vector<8x1xf32>
    %cst_77 = arith.constant 3.200000e+01 : f32
    %197 = vector.broadcast %cst_77 : f32 to vector<8x1xf32>
    %198 = arith.divf %196, %197 : vector<8x1xf32>
    %199 = vector.broadcast %198 : vector<8x1xf32> to vector<8x32xf32>
    %200 = arith.subf %192, %199 : vector<8x32xf32>
    %201 = arith.mulf %200, %200 : vector<8x32xf32>
    %cst_78 = arith.constant dense<0.000000e+00> : vector<8xf32>
    %202 = vector.multi_reduction <add>, %201, %cst_78 [1] : vector<8x32xf32> to vector<8xf32>
    %203 = vector.shape_cast %202 : vector<8xf32> to vector<8x1xf32>
    %cst_79 = arith.constant 3.200000e+01 : f32
    %204 = vector.broadcast %cst_79 : f32 to vector<8x1xf32>
    %205 = arith.divf %203, %204 : vector<8x1xf32>
    %206 = vector.broadcast %198 : vector<8x1xf32> to vector<8x32xf32>
    %207 = arith.subf %192, %206 : vector<8x32xf32>
    %cst_80 = arith.constant 9.99999974E-6 : f32
    %208 = vector.broadcast %cst_80 : f32 to vector<8x1xf32>
    %209 = arith.addf %205, %208 : vector<8x1xf32>
    %210 = math.rsqrt %209 : vector<8x1xf32>
    %211 = vector.broadcast %210 : vector<8x1xf32> to vector<8x32xf32>
    %212 = arith.mulf %207, %211 : vector<8x32xf32>
    %213 = vector.broadcast %193 : vector<1x32xf32> to vector<8x32xf32>
    %214 = arith.mulf %212, %213 : vector<8x32xf32>
    %215 = vector.broadcast %194 : vector<1x32xf32> to vector<8x32xf32>
    %216 = arith.addf %214, %215 : vector<8x32xf32>
    %c0_81 = arith.constant 0 : index
    %c0_82 = arith.constant 0 : index
    %c0_83 = arith.constant 0 : index
    %217 = vector.load %arg19[%c0_81, %c0_82, %c0_83] : memref<1x8x32xf32, #tpu.memory_space<vmem>>, vector<1x8x32xf32>
    %218 = vector.shape_cast %217 : vector<1x8x32xf32> to vector<8x32xf32>
    %219 = vector.shape_cast %216 : vector<8x32xf32> to vector<1x8x32xf32>
    tpu.vector_store %arg19[%c0_81, %c0_82, %c0_83], %219 {strides = array<i32>} : memref<1x8x32xf32, #tpu.memory_space<vmem>>, vector<1x8x32xf32>,
    return
  }
  func.func @transform_0(%arg0: i32, %arg1: memref<2xi32, #tpu.memory_space<smem>>) -> (i32, i32, i32) {
    %c0_i32 = arith.constant 0 : i32
    %c0_i32_0 = arith.constant 0 : i32
    %c0_i32_1 = arith.constant 0 : i32
    return %arg0, %c0_i32, %c0_i32_0 : i32, i32, i32
  }
  func.func @transform_1(%arg0: i32, %arg1: memref<2xi32, #tpu.memory_space<smem>>) -> (i32, i32, i32) {
    %c0_i32 = arith.constant 0 : i32
    %c0_i32_0 = arith.constant 0 : i32
    %c0_i32_1 = arith.constant 0 : i32
    return %arg0, %c0_i32, %c0_i32_0 : i32, i32, i32
  }
  func.func @transform_2(%arg0: i32, %arg1: memref<2xi32, #tpu.memory_space<smem>>) -> (i32, i32) {
    %c0_i32 = arith.constant 0 : i32
    %c0_i32_0 = arith.constant 0 : i32
    %c0_i32_1 = arith.constant 0 : i32
    return %c0_i32, %c0_i32_0 : i32, i32
  }
  func.func @transform_3(%arg0: i32, %arg1: memref<2xi32, #tpu.memory_space<smem>>) -> (i32, i32) {
    %c0_i32 = arith.constant 0 : i32
    %c0_i32_0 = arith.constant 0 : i32
    %c0_i32_1 = arith.constant 0 : i32
    return %c0_i32, %c0_i32_0 : i32, i32
  }
  func.func @transform_4(%arg0: i32, %arg1: memref<2xi32, #tpu.memory_space<smem>>) -> (i32, i32) {
    %c0_i32 = arith.constant 0 : i32
    %c0_i32_0 = arith.constant 0 : i32
    %c0_i32_1 = arith.constant 0 : i32
    return %c0_i32, %c0_i32_0 : i32, i32
  }
  func.func @transform_5(%arg0: i32, %arg1: memref<2xi32, #tpu.memory_space<smem>>) -> (i32, i32) {
    %c0_i32 = arith.constant 0 : i32
    %c0_i32_0 = arith.constant 0 : i32
    %c0_i32_1 = arith.constant 0 : i32
    return %c0_i32, %c0_i32_0 : i32, i32
  }
  func.func @transform_6(%arg0: i32, %arg1: memref<2xi32, #tpu.memory_space<smem>>) -> (i32, i32) {
    %c0_i32 = arith.constant 0 : i32
    %c0_i32_0 = arith.constant 0 : i32
    %c0_i32_1 = arith.constant 0 : i32
    return %c0_i32, %c0_i32_0 : i32, i32
  }
  func.func @transform_7(%arg0: i32, %arg1: memref<2xi32, #tpu.memory_space<smem>>) -> (i32, i32) {
    %c0_i32 = arith.constant 0 : i32
    %c0_i32_0 = arith.constant 0 : i32
    %c0_i32_1 = arith.constant 0 : i32
    return %c0_i32, %c0_i32_0 : i32, i32
  }
  func.func @transform_8(%arg0: i32, %arg1: memref<2xi32, #tpu.memory_space<smem>>) -> (i32, i32) {
    %c0_i32 = arith.constant 0 : i32
    %c0_i32_0 = arith.constant 0 : i32
    %c0_i32_1 = arith.constant 0 : i32
    return %c0_i32, %c0_i32_0 : i32, i32
  }
  func.func @transform_9(%arg0: i32, %arg1: memref<2xi32, #tpu.memory_space<smem>>) -> (i32, i32) {
    %c0_i32 = arith.constant 0 : i32
    %c0_i32_0 = arith.constant 0 : i32
    %c0_i32_1 = arith.constant 0 : i32
    return %c0_i32, %c0_i32_0 : i32, i32
  }
  func.func @transform_10(%arg0: i32, %arg1: memref<2xi32, #tpu.memory_space<smem>>) -> (i32, i32) {
    %c0_i32 = arith.constant 0 : i32
    %c0_i32_0 = arith.constant 0 : i32
    %c0_i32_1 = arith.constant 0 : i32
    return %c0_i32, %c0_i32_0 : i32, i32
  }
  func.func @transform_11(%arg0: i32, %arg1: memref<2xi32, #tpu.memory_space<smem>>) -> (i32, i32) {
    %c0_i32 = arith.constant 0 : i32
    %c0_i32_0 = arith.constant 0 : i32
    %c0_i32_1 = arith.constant 0 : i32
    return %c0_i32, %c0_i32_0 : i32, i32
  }
  func.func @transform_12(%arg0: i32, %arg1: memref<2xi32, #tpu.memory_space<smem>>) -> (i32, i32) {
    %c0_i32 = arith.constant 0 : i32
    %c0_i32_0 = arith.constant 0 : i32
    %c0_i32_1 = arith.constant 0 : i32
    return %c0_i32, %c0_i32_0 : i32, i32
  }
  func.func @transform_13(%arg0: i32, %arg1: memref<2xi32, #tpu.memory_space<smem>>) -> (i32, i32) {
    %c0_i32 = arith.constant 0 : i32
    %c0_i32_0 = arith.constant 0 : i32
    %c0_i32_1 = arith.constant 0 : i32
    return %c0_i32, %c0_i32_0 : i32, i32
  }
  func.func @transform_14(%arg0: i32, %arg1: memref<2xi32, #tpu.memory_space<smem>>) -> (i32, i32) {
    %c0_i32 = arith.constant 0 : i32
    %c0_i32_0 = arith.constant 0 : i32
    %c0_i32_1 = arith.constant 0 : i32
    return %c0_i32, %c0_i32_0 : i32, i32
  }
  func.func @transform_15(%arg0: i32, %arg1: memref<2xi32, #tpu.memory_space<smem>>) -> (i32, i32) {
    %c0_i32 = arith.constant 0 : i32
    %c0_i32_0 = arith.constant 0 : i32
    %c0_i32_1 = arith.constant 0 : i32
    return %c0_i32, %c0_i32_0 : i32, i32
  }
  func.func @transform_16(%arg0: i32, %arg1: memref<2xi32, #tpu.memory_space<smem>>) -> (i32, i32) {
    %c0_i32 = arith.constant 0 : i32
    %c0_i32_0 = arith.constant 0 : i32
    %c0_i32_1 = arith.constant 0 : i32
    return %c0_i32, %c0_i32_0 : i32, i32
  }
  func.func @transform_17(%arg0: i32, %arg1: memref<2xi32, #tpu.memory_space<smem>>) -> (i32, i32, i32) {
    %c0_i32 = arith.constant 0 : i32
    %c0_i32_0 = arith.constant 0 : i32
    %c0_i32_1 = arith.constant 0 : i32
    return %arg0, %c0_i32, %c0_i32_0 : i32, i32, i32
  }
}

</mosaic_0001>

<llo_original>
// kernel: tpu_custom_call.1
$region0: #{tpu_custom_call.1}
  #allocation0 [shape = 'u32[]', space=smem, size = 0x4, offset = 0x4, fixed_abs, tag = 'smem constant byte address 0x4 - core index']
  #allocation1 [shape = 'u32[144,128]{1,0:T(1,128)}', space=vmem, size = 0x12000, scoped, tag = 'internal scratch']
  #allocation2 [shape = 's32[1]{0}', space=sflag, size = 0x4, scoped, tag = 'scoped memory for tpu_custom_call.1']
  #allocation3 [shape = 'u8[512]{0}', space=smem, size = 0x200, scoped, tag = 'prefetched SMEM operand 0']
  %s0 = inlined_call_operand.hbm [shape: s32[2], index: 0, kind: input, shape index: {}]
  %s1 = inlined_call_operand.vmem [shape: f32[2,8,32], index: 1, kind: input, shape index: {}]
  %s2 = inlined_call_operand.vmem [shape: f32[2,8,32], index: 2, kind: input, shape index: {}]
  %s3 = inlined_call_operand.vmem [shape: bf16[32,192], index: 3, kind: input, shape index: {}]
  %s4 = inlined_call_operand.vmem [shape: bf16[64,32], index: 4, kind: input, shape index: {}]
  %s5 = inlined_call_operand.vmem [shape: bf16[32,64], index: 5, kind: input, shape index: {}]
  %s6 = inlined_call_operand.vmem [shape: bf16[32,128], index: 6, kind: input, shape index: {}]
  %s7 = inlined_call_operand.vmem [shape: bf16[64,32], index: 7, kind: input, shape index: {}]
  %s8 = inlined_call_operand.vmem [shape: f32[1,32], index: 8, kind: input, shape index: {}]
  %s9 = inlined_call_operand.vmem [shape: f32[1,32], index: 9, kind: input, shape index: {}]
  %s10 = inlined_call_operand.vmem [shape: f32[1,32], index: 10, kind: input, shape index: {}]
  %s11 = inlined_call_operand.vmem [shape: f32[1,32], index: 11, kind: input, shape index: {}]
  %s12 = inlined_call_operand.vmem [shape: f32[1,32], index: 12, kind: input, shape index: {}]
  %s13 = inlined_call_operand.vmem [shape: f32[1,32], index: 13, kind: input, shape index: {}]
  %s14 = inlined_call_operand.vmem [shape: bf16[32,64], index: 14, kind: input, shape index: {}]
  %s15 = inlined_call_operand.vmem [shape: f32[1,64], index: 15, kind: input, shape index: {}]
  %s16 = inlined_call_operand.vmem [shape: bf16[64,32], index: 16, kind: input, shape index: {}]
  %s17 = inlined_call_operand.vmem [shape: f32[1,32], index: 17, kind: input, shape index: {}]
  %s18 = inlined_call_operand.hbm [shape: f32[2,8,32], index: 18, kind: output, shape index: {}]
  %s19 = sld [smem:[#allocation0]]
  $region101: #{tpu_custom_call.1} parent=0
    _
  %s21 = ssub.s32 1, %s19
  %s22 = scalar_select 0, %s21, %s19
  %24 = dma.hbm_to_smem %s0, 16, [#allocation3], [#allocation2]
  %25 = dma.done [#allocation2], 16
  %26 = sfence
  $region1: #{tpu_custom_call.1} parent=0
    #allocation4 [shape = 'u8[8192]{0}', space=vmem, size = 0x2000, scoped, tag = 'output window, operand 0']
    #allocation5 [shape = 's32[2]{0}', space=sflag, size = 0x8, scoped, tag = 'scoped memory for tpu_custom_call.1']
    %27 = vsyncpa [#allocation5], 0
    %s28 = scalar_lea.sflag [#allocation5], 1
    %29 = vsyncpa %s28, 0
    loop: start=0, step=1, limit=4
    $region2: #{tpu_custom_call.1} parent=1 // loop_pre_header
      _
    $region3: #{tpu_custom_call.1} parent=1 // loop_header
      %s31 = sphi 0, %s35
      %p32 = scmp.ge.s32.totalorder %s31, 4
      %s41 = sphi 0, %s43
      %s44 = sphi 0, %s41
      %s45 = sphi 0, %s44
      %s61 = sphi 0, %s45
      %s67 = sphi 0, %s69
      %s70 = sphi 0, %s67
      %s71 = sphi 0, %s70
      %s87 = sphi 0, %s71
      %s91 = sphi 0, %s91
      %s93 = sphi 0, %s91
      %s94 = sphi 0, %s93
      %s108 = sphi 0, %s94
      %s112 = sphi 0, %s112
      %s114 = sphi 0, %s112
      %s115 = sphi 0, %s114
      %s129 = sphi 0, %s115
      %s133 = sphi 0, %s133
      %s135 = sphi 0, %s133
      %s136 = sphi 0, %s135
      %s150 = sphi 0, %s136
      %s154 = sphi 0, %s154
      %s156 = sphi 0, %s154
      %s157 = sphi 0, %s156
      %s171 = sphi 0, %s157
      %s175 = sphi 0, %s175
      %s177 = sphi 0, %s175
      %s178 = sphi 0, %s177
      %s192 = sphi 0, %s178
      %s196 = sphi 0, %s196
      %s198 = sphi 0, %s196
      %s199 = sphi 0, %s198
      %s213 = sphi 0, %s199
      %s217 = sphi 0, %s217
      %s219 = sphi 0, %s217
      %s220 = sphi 0, %s219
      %s234 = sphi 0, %s220
      %s238 = sphi 0, %s238
      %s240 = sphi 0, %s238
      %s241 = sphi 0, %s240
      %s255 = sphi 0, %s241
      %s259 = sphi 0, %s259
      %s261 = sphi 0, %s259
      %s262 = sphi 0, %s261
      %s276 = sphi 0, %s262
      %s280 = sphi 0, %s280
      %s282 = sphi 0, %s280
      %s283 = sphi 0, %s282
      %s297 = sphi 0, %s283
      %s301 = sphi 0, %s301
      %s303 = sphi 0, %s301
      %s304 = sphi 0, %s303
      %s318 = sphi 0, %s304
      %s322 = sphi 0, %s322
      %s324 = sphi 0, %s322
      %s325 = sphi 0, %s324
      %s339 = sphi 0, %s325
      %s343 = sphi 0, %s343
      %s345 = sphi 0, %s343
      %s346 = sphi 0, %s345
      %s360 = sphi 0, %s346
      %s364 = sphi 0, %s364
      %s366 = sphi 0, %s364
      %s367 = sphi 0, %s366
      %s381 = sphi 0, %s367
      %s385 = sphi 0, %s385
      %s387 = sphi 0, %s385
      %s388 = sphi 0, %s387
      %s402 = sphi 0, %s388
      %s408 = sphi 0, %s410
      %s411 = sphi 0, %s408
      %s412 = sphi 0, %s411
      %s428 = sphi 0, %s412
    $region4: #{tpu_custom_call.1} parent=1 // loop_header_branch
      %34 = sbr.rel (%p32) target = $region8
    $region5: #{tpu_custom_call.1} parent=1 // loop_body
      %s36 = ssub.s32 %s31, 1
      %s37 = ssub.s32 %s31, 2
      %s38 = sadd.s32 %s31, 1
      %s39 = ssub.s32 %s31, %s38
      %p40 = scmp.eq.s32.totalorder %s39, 0
      %s42 = sadd.s32 %s41, 1
      %s43 = scalar_select %p40, %s41, %s42
      %p46 = pneg %p40
      %p47 = scmp.eq.s32.totalorder %s31, 1
      %p48 = por %p46, %p47
      %p49 = scmp.ne.s32.totalorder %s41, %s44
      %p50 = scmp.eq.s32.totalorder %s31, 0
      %p51 = por %p49, %p50
      %p52 = scmp.ne.s32.totalorder %s41, %s44
      %p53 = scmp.eq.s32.totalorder %s36, 1
      %p54 = por %p52, %p53
      %p55 = scmp.ne.s32.totalorder %s44, %s45
      %p56 = scmp.eq.s32.totalorder %s36, 0
      %p57 = por %p55, %p56
      %p58 = scmp.ne.s32.totalorder %s44, %s45
      %p59 = scmp.eq.s32.totalorder %s37, 1
      %p60 = por %p58, %p59
      %p62 = scmp.ne.s32.totalorder %s45, %s61
      %p63 = scmp.eq.s32.totalorder %s37, 0
      %p64 = por %p62, %p63
      %s65 = ssub.s32 %s31, %s38
      %p66 = scmp.eq.s32.totalorder %s65, 0
      %s68 = sadd.s32 %s67, 1
      %s69 = scalar_select %p66, %s67, %s68
      %p72 = pneg %p66
      %p73 = scmp.eq.s32.totalorder %s31, 1
      %p74 = por %p72, %p73
      %p75 = scmp.ne.s32.totalorder %s67, %s70
      %p76 = scmp.eq.s32.totalorder %s31, 0
      %p77 = por %p75, %p76
      %p78 = scmp.ne.s32.totalorder %s67, %s70
      %p79 = scmp.eq.s32.totalorder %s36, 1
      %p80 = por %p78, %p79
      %p81 = scmp.ne.s32.totalorder %s70, %s71
      %p82 = scmp.eq.s32.totalorder %s36, 0
      %p83 = por %p81, %p82
      %p84 = scmp.ne.s32.totalorder %s70, %s71
      %p85 = scmp.eq.s32.totalorder %s37, 1
      %p86 = por %p84, %p85
      %p88 = scmp.ne.s32.totalorder %s71, %s87
      %p89 = scmp.eq.s32.totalorder %s37, 0
      %p90 = por %p88, %p89
      %s92 = sadd.s32 %s91, 1
      %p95 = scmp.eq.s32.totalorder %s31, 1
      %p96 = scmp.ne.s32.totalorder %s91, %s93
      %p97 = scmp.eq.s32.totalorder %s31, 0
      %p98 = por %p96, %p97
      %p99 = scmp.ne.s32.totalorder %s91, %s93
      %p100 = scmp.eq.s32.totalorder %s36, 1
      %p101 = por %p99, %p100
      %p102 = scmp.ne.s32.totalorder %s93, %s94
      %p103 = scmp.eq.s32.totalorder %s36, 0
      %p104 = por %p102, %p103
      %p105 = scmp.ne.s32.totalorder %s93, %s94
      %p106 = scmp.eq.s32.totalorder %s37, 1
      %p107 = por %p105, %p106
      %p109 = scmp.ne.s32.totalorder %s94, %s108
      %p110 = scmp.eq.s32.totalorder %s37, 0
      %p111 = por %p109, %p110
      %s113 = sadd.s32 %s112, 1
      %p116 = scmp.eq.s32.totalorder %s31, 1
      %p117 = scmp.ne.s32.totalorder %s112, %s114
      %p118 = scmp.eq.s32.totalorder %s31, 0
      %p119 = por %p117, %p118
      %p120 = scmp.ne.s32.totalorder %s112, %s114
      %p121 = scmp.eq.s32.totalorder %s36, 1
      %p122 = por %p120, %p121
      %p123 = scmp.ne.s32.totalorder %s114, %s115
      %p124 = scmp.eq.s32.totalorder %s36, 0
      %p125 = por %p123, %p124
      %p126 = scmp.ne.s32.totalorder %s114, %s115
      %p127 = scmp.eq.s32.totalorder %s37, 1
      %p128 = por %p126, %p127
      %p130 = scmp.ne.s32.totalorder %s115, %s129
      %p131 = scmp.eq.s32.totalorder %s37, 0
      %p132 = por %p130, %p131
      %s134 = sadd.s32 %s133, 1
      %p137 = scmp.eq.s32.totalorder %s31, 1
      %p138 = scmp.ne.s32.totalorder %s133, %s135
      %p139 = scmp.eq.s32.totalorder %s31, 0
      %p140 = por %p138, %p139
      %p141 = scmp.ne.s32.totalorder %s133, %s135
      %p142 = scmp.eq.s32.totalorder %s36, 1
      %p143 = por %p141, %p142
      %p144 = scmp.ne.s32.totalorder %s135, %s136
      %p145 = scmp.eq.s32.totalorder %s36, 0
      %p146 = por %p144, %p145
      %p147 = scmp.ne.s32.totalorder %s135, %s136
      %p148 = scmp.eq.s32.totalorder %s37, 1
      %p149 = por %p147, %p148
      %p151 = scmp.ne.s32.totalorder %s136, %s150
      %p152 = scmp.eq.s32.totalorder %s37, 0
      %p153 = por %p151, %p152
      %s155 = sadd.s32 %s154, 1
      %p158 = scmp.eq.s32.totalorder %s31, 1
      %p159 = scmp.ne.s32.totalorder %s154, %s156
      %p160 = scmp.eq.s32.totalorder %s31, 0
      %p161 = por %p159, %p160
      %p162 = scmp.ne.s32.totalorder %s154, %s156
      %p163 = scmp.eq.s32.totalorder %s36, 1
      %p164 = por %p162, %p163
      %p165 = scmp.ne.s32.totalorder %s156, %s157
      %p166 = scmp.eq.s32.totalorder %s36, 0
      %p167 = por %p165, %p166
      %p168 = scmp.ne.s32.totalorder %s156, %s157
      %p169 = scmp.eq.s32.totalorder %s37, 1
      %p170 = por %p168, %p169
      %p172 = scmp.ne.s32.totalorder %s157, %s171
      %p173 = scmp.eq.s32.totalorder %s37, 0
      %p174 = por %p172, %p173
      %s176 = sadd.s32 %s175, 1
      %p179 = scmp.eq.s32.totalorder %s31, 1
      %p180 = scmp.ne.s32.totalorder %s175, %s177
      %p181 = scmp.eq.s32.totalorder %s31, 0
      %p182 = por %p180, %p181
      %p183 = scmp.ne.s32.totalorder %s175, %s177
      %p184 = scmp.eq.s32.totalorder %s36, 1
      %p185 = por %p183, %p184
      %p186 = scmp.ne.s32.totalorder %s177, %s178
      %p187 = scmp.eq.s32.totalorder %s36, 0
      %p188 = por %p186, %p187
      %p189 = scmp.ne.s32.totalorder %s177, %s178
      %p190 = scmp.eq.s32.totalorder %s37, 1
      %p191 = por %p189, %p190
      %p193 = scmp.ne.s32.totalorder %s178, %s192
      %p194 = scmp.eq.s32.totalorder %s37, 0
      %p195 = por %p193, %p194
      %s197 = sadd.s32 %s196, 1
      %p200 = scmp.eq.s32.totalorder %s31, 1
      %p201 = scmp.ne.s32.totalorder %s196, %s198
      %p202 = scmp.eq.s32.totalorder %s31, 0
      %p203 = por %p201, %p202
      %p204 = scmp.ne.s32.totalorder %s196, %s198
      %p205 = scmp.eq.s32.totalorder %s36, 1
      %p206 = por %p204, %p205
      %p207 = scmp.ne.s32.totalorder %s198, %s199
      %p208 = scmp.eq.s32.totalorder %s36, 0
      %p209 = por %p207, %p208
      %p210 = scmp.ne.s32.totalorder %s198, %s199
      %p211 = scmp.eq.s32.totalorder %s37, 1
      %p212 = por %p210, %p211
      %p214 = scmp.ne.s32.totalorder %s199, %s213
      %p215 = scmp.eq.s32.totalorder %s37, 0
      %p216 = por %p214, %p215
      %s218 = sadd.s32 %s217, 1
      %p221 = scmp.eq.s32.totalorder %s31, 1
      %p222 = scmp.ne.s32.totalorder %s217, %s219
      %p223 = scmp.eq.s32.totalorder %s31, 0
      %p224 = por %p222, %p223
      %p225 = scmp.ne.s32.totalorder %s217, %s219
      %p226 = scmp.eq.s32.totalorder %s36, 1
      %p227 = por %p225, %p226
      %p228 = scmp.ne.s32.totalorder %s219, %s220
      %p229 = scmp.eq.s32.totalorder %s36, 0
      %p230 = por %p228, %p229
      %p231 = scmp.ne.s32.totalorder %s219, %s220
      %p232 = scmp.eq.s32.totalorder %s37, 1
      %p233 = por %p231, %p232
      %p235 = scmp.ne.s32.totalorder %s220, %s234
      %p236 = scmp.eq.s32.totalorder %s37, 0
      %p237 = por %p235, %p236
      %s239 = sadd.s32 %s238, 1
      %p242 = scmp.eq.s32.totalorder %s31, 1
      %p243 = scmp.ne.s32.totalorder %s238, %s240
      %p244 = scmp.eq.s32.totalorder %s31, 0
      %p245 = por %p243, %p244
      %p246 = scmp.ne.s32.totalorder %s238, %s240
      %p247 = scmp.eq.s32.totalorder %s36, 1
      %p248 = por %p246, %p247
      %p249 = scmp.ne.s32.totalorder %s240, %s241
      %p250 = scmp.eq.s32.totalorder %s36, 0
      %p251 = por %p249, %p250
      %p252 = scmp.ne.s32.totalorder %s240, %s241
      %p253 = scmp.eq.s32.totalorder %s37, 1
      %p254 = por %p252, %p253
      %p256 = scmp.ne.s32.totalorder %s241, %s255
      %p257 = scmp.eq.s32.totalorder %s37, 0
      %p258 = por %p256, %p257
      %s260 = sadd.s32 %s259, 1
      %p263 = scmp.eq.s32.totalorder %s31, 1
      %p264 = scmp.ne.s32.totalorder %s259, %s261
      %p265 = scmp.eq.s32.totalorder %s31, 0
      %p266 = por %p264, %p265
      %p267 = scmp.ne.s32.totalorder %s259, %s261
      %p268 = scmp.eq.s32.totalorder %s36, 1
      %p269 = por %p267, %p268
      %p270 = scmp.ne.s32.totalorder %s261, %s262
      %p271 = scmp.eq.s32.totalorder %s36, 0
      %p272 = por %p270, %p271
      %p273 = scmp.ne.s32.totalorder %s261, %s262
      %p274 = scmp.eq.s32.totalorder %s37, 1
      %p275 = por %p273, %p274
      %p277 = scmp.ne.s32.totalorder %s262, %s276
      %p278 = scmp.eq.s32.totalorder %s37, 0
      %p279 = por %p277, %p278
      %s281 = sadd.s32 %s280, 1
      %p284 = scmp.eq.s32.totalorder %s31, 1
      %p285 = scmp.ne.s32.totalorder %s280, %s282
      %p286 = scmp.eq.s32.totalorder %s31, 0
      %p287 = por %p285, %p286
      %p288 = scmp.ne.s32.totalorder %s280, %s282
      %p289 = scmp.eq.s32.totalorder %s36, 1
      %p290 = por %p288, %p289
      %p291 = scmp.ne.s32.totalorder %s282, %s283
      %p292 = scmp.eq.s32.totalorder %s36, 0
      %p293 = por %p291, %p292
      %p294 = scmp.ne.s32.totalorder %s282, %s283
      %p295 = scmp.eq.s32.totalorder %s37, 1
      %p296 = por %p294, %p295
      %p298 = scmp.ne.s32.totalorder %s283, %s297
      %p299 = scmp.eq.s32.totalorder %s37, 0
      %p300 = por %p298, %p299
      %s302 = sadd.s32 %s301, 1
      %p305 = scmp.eq.s32.totalorder %s31, 1
      %p306 = scmp.ne.s32.totalorder %s301, %s303
      %p307 = scmp.eq.s32.totalorder %s31, 0
      %p308 = por %p306, %p307
      %p309 = scmp.ne.s32.totalorder %s301, %s303
      %p310 = scmp.eq.s32.totalorder %s36, 1
      %p311 = por %p309, %p310
      %p312 = scmp.ne.s32.totalorder %s303, %s304
      %p313 = scmp.eq.s32.totalorder %s36, 0
      %p314 = por %p312, %p313
      %p315 = scmp.ne.s32.totalorder %s303, %s304
      %p316 = scmp.eq.s32.totalorder %s37, 1
      %p317 = por %p315, %p316
      %p319 = scmp.ne.s32.totalorder %s304, %s318
      %p320 = scmp.eq.s32.totalorder %s37, 0
      %p321 = por %p319, %p320
      %s323 = sadd.s32 %s322, 1
      %p326 = scmp.eq.s32.totalorder %s31, 1
      %p327 = scmp.ne.s32.totalorder %s322, %s324
      %p328 = scmp.eq.s32.totalorder %s31, 0
      %p329 = por %p327, %p328
      %p330 = scmp.ne.s32.totalorder %s322, %s324
      %p331 = scmp.eq.s32.totalorder %s36, 1
      %p332 = por %p330, %p331
      %p333 = scmp.ne.s32.totalorder %s324, %s325
      %p334 = scmp.eq.s32.totalorder %s36, 0
      %p335 = por %p333, %p334
      %p336 = scmp.ne.s32.totalorder %s324, %s325
      %p337 = scmp.eq.s32.totalorder %s37, 1
      %p338 = por %p336, %p337
      %p340 = scmp.ne.s32.totalorder %s325, %s339
      %p341 = scmp.eq.s32.totalorder %s37, 0
      %p342 = por %p340, %p341
      %s344 = sadd.s32 %s343, 1
      %p347 = scmp.eq.s32.totalorder %s31, 1
      %p348 = scmp.ne.s32.totalorder %s343, %s345
      %p349 = scmp.eq.s32.totalorder %s31, 0
      %p350 = por %p348, %p349
      %p351 = scmp.ne.s32.totalorder %s343, %s345
      %p352 = scmp.eq.s32.totalorder %s36, 1
      %p353 = por %p351, %p352
      %p354 = scmp.ne.s32.totalorder %s345, %s346
      %p355 = scmp.eq.s32.totalorder %s36, 0
      %p356 = por %p354, %p355
      %p357 = scmp.ne.s32.totalorder %s345, %s346
      %p358 = scmp.eq.s32.totalorder %s37, 1
      %p359 = por %p357, %p358
      %p361 = scmp.ne.s32.totalorder %s346, %s360
      %p362 = scmp.eq.s32.totalorder %s37, 0
      %p363 = por %p361, %p362
      %s365 = sadd.s32 %s364, 1
      %p368 = scmp.eq.s32.totalorder %s31, 1
      %p369 = scmp.ne.s32.totalorder %s364, %s366
      %p370 = scmp.eq.s32.totalorder %s31, 0
      %p371 = por %p369, %p370
      %p372 = scmp.ne.s32.totalorder %s364, %s366
      %p373 = scmp.eq.s32.totalorder %s36, 1
      %p374 = por %p372, %p373
      %p375 = scmp.ne.s32.totalorder %s366, %s367
      %p376 = scmp.eq.s32.totalorder %s36, 0
      %p377 = por %p375, %p376
      %p378 = scmp.ne.s32.totalorder %s366, %s367
      %p379 = scmp.eq.s32.totalorder %s37, 1
      %p380 = por %p378, %p379
      %p382 = scmp.ne.s32.totalorder %s367, %s381
      %p383 = scmp.eq.s32.totalorder %s37, 0
      %p384 = por %p382, %p383
      %s386 = sadd.s32 %s385, 1
      %p389 = scmp.eq.s32.totalorder %s31, 1
      %p390 = scmp.ne.s32.totalorder %s385, %s387
      %p391 = scmp.eq.s32.totalorder %s31, 0
      %p392 = por %p390, %p391
      %p393 = scmp.ne.s32.totalorder %s385, %s387
      %p394 = scmp.eq.s32.totalorder %s36, 1
      %p395 = por %p393, %p394
      %p396 = scmp.ne.s32.totalorder %s387, %s388
      %p397 = scmp.eq.s32.totalorder %s36, 0
      %p398 = por %p396, %p397
      %p399 = scmp.ne.s32.totalorder %s387, %s388
      %p400 = scmp.eq.s32.totalorder %s37, 1
      %p401 = por %p399, %p400
      %p403 = scmp.ne.s32.totalorder %s388, %s402
      %p404 = scmp.eq.s32.totalorder %s37, 0
      %p405 = por %p403, %p404
      %s406 = ssub.s32 %s31, %s38
      %p407 = scmp.eq.s32.totalorder %s406, 0
      %s409 = sadd.s32 %s408, 1
      %s410 = scalar_select %p407, %s408, %s409
      %p413 = pneg %p407
      %p414 = scmp.eq.s32.totalorder %s31, 1
      %p415 = por %p413, %p414
      %p416 = scmp.ne.s32.totalorder %s408, %s411
      %p417 = scmp.eq.s32.totalorder %s31, 0
      %p418 = por %p416, %p417
      %p419 = scmp.ne.s32.totalorder %s408, %s411
      %p420 = scmp.eq.s32.totalorder %s36, 1
      %p421 = por %p419, %p420
      %p422 = scmp.ne.s32.totalorder %s411, %s412
      %p423 = scmp.eq.s32.totalorder %s36, 0
      %p424 = por %p422, %p423
      %p425 = scmp.ne.s32.totalorder %s411, %s412
      %p426 = scmp.eq.s32.totalorder %s37, 1
      %p427 = por %p425, %p426
      %p429 = scmp.ne.s32.totalorder %s412, %s428
      %p430 = scmp.eq.s32.totalorder %s37, 0
      %p431 = por %p429, %p430
      %p432 = scmp.le.s32.totalorder 1, %s31
      %p433 = scmp.lt.s32.totalorder %s31, 3
      %p434 = pnand %p432, %p433
      %p435 = pneg %p434
      // Predicated region
      $region9: #{tpu_custom_call.1} parent=5 // pred_check
        _
      $region10: #{tpu_custom_call.1} parent=5 // pred_check_branch
        %437 = sbr.rel (%p434) target = $region12
      $region11: #{tpu_custom_call.1} parent=5 // pred_region
        %s438 = ssub.s32 %s31, 1
        // Predicated region
        $region13: #{tpu_custom_call.1} parent=11 // pred_check
          %p439 = pneg %p104
        $region14: #{tpu_custom_call.1} parent=11 // pred_check_branch
          %441 = sbr.rel (%p439) target = $region16
        $region15: #{tpu_custom_call.1} parent=11 // pred_region
          _
        $region16: #{tpu_custom_call.1} parent=11 // pred_fallthru
          _
        // Predicated region
        $region17: #{tpu_custom_call.1} parent=11 // pred_check
          %p442 = pneg %p125
        $region18: #{tpu_custom_call.1} parent=11 // pred_check_branch
          %444 = sbr.rel (%p442) target = $region20
        $region19: #{tpu_custom_call.1} parent=11 // pred_region
          _
        $region20: #{tpu_custom_call.1} parent=11 // pred_fallthru
          _
        // Predicated region
        $region21: #{tpu_custom_call.1} parent=11 // pred_check
          %p445 = pneg %p146
        $region22: #{tpu_custom_call.1} parent=11 // pred_check_branch
          %447 = sbr.rel (%p445) target = $region24
        $region23: #{tpu_custom_call.1} parent=11 // pred_region
          _
        $region24: #{tpu_custom_call.1} parent=11 // pred_fallthru
          _
        // Predicated region
        $region25: #{tpu_custom_call.1} parent=11 // pred_check
          %p448 = pneg %p167
        $region26: #{tpu_custom_call.1} parent=11 // pred_check_branch
          %450 = sbr.rel (%p448) target = $region28
        $region27: #{tpu_custom_call.1} parent=11 // pred_region
          _
        $region28: #{tpu_custom_call.1} parent=11 // pred_fallthru
          _
        // Predicated region
        $region29: #{tpu_custom_call.1} parent=11 // pred_check
          %p451 = pneg %p188
        $region30: #{tpu_custom_call.1} parent=11 // pred_check_branch
          %453 = sbr.rel (%p451) target = $region32
        $region31: #{tpu_custom_call.1} parent=11 // pred_region
          _
        $region32: #{tpu_custom_call.1} parent=11 // pred_fallthru
          _
        // Predicated region
        $region33: #{tpu_custom_call.1} parent=11 // pred_check
          %p454 = pneg %p209
        $region34: #{tpu_custom_call.1} parent=11 // pred_check_branch
          %456 = sbr.rel (%p454) target = $region36
        $region35: #{tpu_custom_call.1} parent=11 // pred_region
          _
        $region36: #{tpu_custom_call.1} parent=11 // pred_fallthru
          _
        // Predicated region
        $region37: #{tpu_custom_call.1} parent=11 // pred_check
          %p457 = pneg %p230
        $region38: #{tpu_custom_call.1} parent=11 // pred_check_branch
          %459 = sbr.rel (%p457) target = $region40
        $region39: #{tpu_custom_call.1} parent=11 // pred_region
          _
        $region40: #{tpu_custom_call.1} parent=11 // pred_fallthru
          _
        // Predicated region
        $region41: #{tpu_custom_call.1} parent=11 // pred_check
          %p460 = pneg %p251
        $region42: #{tpu_custom_call.1} parent=11 // pred_check_branch
          %462 = sbr.rel (%p460) target = $region44
        $region43: #{tpu_custom_call.1} parent=11 // pred_region
          _
        $region44: #{tpu_custom_call.1} parent=11 // pred_fallthru
          _
        // Predicated region
        $region45: #{tpu_custom_call.1} parent=11 // pred_check
          %p463 = pneg %p272
        $region46: #{tpu_custom_call.1} parent=11 // pred_check_branch
          %465 = sbr.rel (%p463) target = $region48
        $region47: #{tpu_custom_call.1} parent=11 // pred_region
          _
        $region48: #{tpu_custom_call.1} parent=11 // pred_fallthru
          _
        // Predicated region
        $region49: #{tpu_custom_call.1} parent=11 // pred_check
          %p466 = pneg %p293
        $region50: #{tpu_custom_call.1} parent=11 // pred_check_branch
          %468 = sbr.rel (%p466) target = $region52
        $region51: #{tpu_custom_call.1} parent=11 // pred_region
          _
        $region52: #{tpu_custom_call.1} parent=11 // pred_fallthru
          _
        // Predicated region
        $region53: #{tpu_custom_call.1} parent=11 // pred_check
          %p469 = pneg %p314
        $region54: #{tpu_custom_call.1} parent=11 // pred_check_branch
          %471 = sbr.rel (%p469) target = $region56
        $region55: #{tpu_custom_call.1} parent=11 // pred_region
          _
        $region56: #{tpu_custom_call.1} parent=11 // pred_fallthru
          _
        // Predicated region
        $region57: #{tpu_custom_call.1} parent=11 // pred_check
          %p472 = pneg %p335
        $region58: #{tpu_custom_call.1} parent=11 // pred_check_branch
          %474 = sbr.rel (%p472) target = $region60
        $region59: #{tpu_custom_call.1} parent=11 // pred_region
          _
        $region60: #{tpu_custom_call.1} parent=11 // pred_fallthru
          _
        // Predicated region
        $region61: #{tpu_custom_call.1} parent=11 // pred_check
          %p475 = pneg %p356
        $region62: #{tpu_custom_call.1} parent=11 // pred_check_branch
          %477 = sbr.rel (%p475) target = $region64
        $region63: #{tpu_custom_call.1} parent=11 // pred_region
          _
        $region64: #{tpu_custom_call.1} parent=11 // pred_fallthru
          _
        // Predicated region
        $region65: #{tpu_custom_call.1} parent=11 // pred_check
          %p478 = pneg %p377
        $region66: #{tpu_custom_call.1} parent=11 // pred_check_branch
          %480 = sbr.rel (%p478) target = $region68
        $region67: #{tpu_custom_call.1} parent=11 // pred_region
          _
        $region68: #{tpu_custom_call.1} parent=11 // pred_fallthru
          _
        // Predicated region
        $region69: #{tpu_custom_call.1} parent=11 // pred_check
          %p481 = pneg %p398
        $region70: #{tpu_custom_call.1} parent=11 // pred_check_branch
          %483 = sbr.rel (%p481) target = $region72
        $region71: #{tpu_custom_call.1} parent=11 // pred_region
          _
        $region72: #{tpu_custom_call.1} parent=11 // pred_fallthru
          _
      $region12: #{tpu_custom_call.1} parent=5 // pred_fallthru
        _
      %p484 = scmp.lt.s32.totalorder %s31, 2
      // Predicated region
      $region73: #{tpu_custom_call.1} parent=5 // pred_check
        %p485 = pneg %p484
      $region74: #{tpu_custom_call.1} parent=5 // pred_check_branch
        %487 = sbr.rel (%p485) target = $region76
      $region75: #{tpu_custom_call.1} parent=5 // pred_region
        // Predicated region
        $region77: #{tpu_custom_call.1} parent=75 // pred_check
          %p488 = pneg %p51
        $region78: #{tpu_custom_call.1} parent=75 // pred_check_branch
          %490 = sbr.rel (%p488) target = $region80
        $region79: #{tpu_custom_call.1} parent=75 // pred_region
          %p491 = scmp.lt.s32.totalorder %s31, 1
          %s492 = scalar_select %p491, %s31, 1
          %s493 = smul.addr %s492, 8
          %s494 = scalar_lea.vmem %s1, %s493
        $region80: #{tpu_custom_call.1} parent=75 // pred_fallthru
          _
        // Predicated region
        $region81: #{tpu_custom_call.1} parent=75 // pred_check
          %p495 = pneg %p77
        $region82: #{tpu_custom_call.1} parent=75 // pred_check_branch
          %497 = sbr.rel (%p495) target = $region84
        $region83: #{tpu_custom_call.1} parent=75 // pred_region
          %p498 = scmp.lt.s32.totalorder %s31, 1
          %s499 = scalar_select %p498, %s31, 1
          %s500 = smul.addr %s499, 8
          %s501 = scalar_lea.vmem %s2, %s500
        $region84: #{tpu_custom_call.1} parent=75 // pred_fallthru
          _
      $region76: #{tpu_custom_call.1} parent=5 // pred_fallthru
        _
      %p502 = scmp.le.s32.totalorder 1, %s31
      %p503 = scmp.lt.s32.totalorder %s31, 3
      %p504 = pnand %p502, %p503
      %p505 = pneg %p504
      // Predicated region
      $region85: #{tpu_custom_call.1} parent=5 // pred_check
        _
      $region86: #{tpu_custom_call.1} parent=5 // pred_check_branch
        %507 = sbr.rel (%p504) target = $region88
      $region87: #{tpu_custom_call.1} parent=5 // pred_region
        %s508 = ssub.s32 %s31, 1
        %p509 = scmp.lt.s32.totalorder %s36, 1
        %s510 = scalar_select %p509, %s36, 1
        %s511 = smul.addr %s510, 8
        %s512 = scalar_lea.vmem %s1, %s511
        %p513 = pneg %p57
        %p514 = pneg %p54
        %p515 = scmp.lt.s32.totalorder %s36, 1
        %s516 = scalar_select %p515, %s36, 1
        %s517 = smul.addr %s516, 8
        %s518 = scalar_lea.vmem %s2, %s517
        %p519 = pneg %p83
        %p520 = pneg %p80
        %p521 = pneg %p104
        %p522 = pneg %p101
        %p523 = pneg %p125
        %p524 = pneg %p122
        %p525 = pneg %p146
        %p526 = pneg %p143
        %p527 = pneg %p167
        %p528 = pneg %p164
        %p529 = pneg %p188
        %p530 = pneg %p185
        %p531 = pneg %p209
        %p532 = pneg %p206
        %p533 = pneg %p230
        %p534 = pneg %p227
        %p535 = pneg %p251
        %p536 = pneg %p248
        %p537 = pneg %p272
        %p538 = pneg %p269
        %p539 = pneg %p293
        %p540 = pneg %p290
        %p541 = pneg %p314
        %p542 = pneg %p311
        %p543 = pneg %p335
        %p544 = pneg %p332
        %p545 = pneg %p356
        %p546 = pneg %p353
        %p547 = pneg %p377
        %p548 = pneg %p374
        %p549 = pneg %p398
        %p550 = pneg %p395
        %p551 = pneg %p424
        %p552 = pneg %p421
        %s553 = sand.u32 %s411, 1
        %s554 = scalar_lea.sflag [#allocation5], %s553
        %s555 = sand.u32 %s411, 1
        %s556 = smul.addr %s555, 8
        %s557 = scalar_lea.vmem [#allocation4], %s556
        %p558 = scmp.lt.s32.totalorder %s36, 1
        %s559 = scalar_select %p558, %s36, 1
        %s560 = smul.addr %s559, 8
        %s561 = scalar_lea.vmem %s1, %s560
        %p562 = scmp.lt.s32.totalorder %s36, 1
        %s563 = scalar_select %p562, %s36, 1
        %s564 = smul.addr %s563, 8
        %s565 = scalar_lea.vmem %s2, %s564
        %v567 = vld [vmem:[%s561] sm:$0xff]
        %v568 = vld [vmem:[%s565] sm:$0xff]
        %v569 = vlaneseq
        %v570 = vshrl.u32 %v569, 7
        %v571 = vlaneseq
        %v572 = vand.u32 %v571, 127
        %vm573 = vcmp.le.s32.totalorder %v572, %v570
        %v574 = vsel %vm573, 0.0, -1000000.0
        %s575 = sld [smem:[#allocation3 + %s36]]
        %v576 = vstv %s575
        %vm577 = vcmp.lt.s32.totalorder %v572, %v576
        %v578 = vsel %vm577, 0.0, -1000000.0
        %v579 = vpack.c.bf16 %v567, %v567
        %v580 = vld [vmem:[%s3] sm:$0xff]
        %v581 = vld [vmem:[%s3 + $0x8] sm:$0xff]
        %v582 = vld [vmem:[%s3 + $0x10] sm:$0xff]
        %v583 = vld [vmem:[%s3 + $0x18] sm:$0xff]
        %v588 = vunpack.c.l.b16 %v580
        %v589 = vunpack.c.h.b16 %v580
        %v590 = vunpack.c.l.b16 %v581
        %v591 = vunpack.c.h.b16 %v581
        %v592 = vunpack.c.l.b16 %v582
        %v593 = vunpack.c.h.b16 %v582
        %v594 = vunpack.c.l.b16 %v583
        %v595 = vunpack.c.h.b16 %v583
        %v596 = vpack.c.b16 %v590, %v588
        %v597 = vpack.c.b16 %v591, %v589
        %v598 = vpack.c.b16 %v594, %v592
        %v599 = vpack.c.b16 %v595, %v593
        %vm604 = vcmask 261120
        %v606 = vsel %vm604, %v579, 0
        %608 = vmatprep.subr.bf16.mxu0 %v597
        %609 = vmatpush1.bf16.msra.mxu0 %v596
        %610 = vmatprep.subr.bf16.mxu0 %v599
        %611 = vmatpush1.bf16.msra.mxu0 %v598
        %612 = vmatprep.subr.bf16.mxu0 0
        %613 = vmatpush1.bf16.msra.mxu0 0
        %614 = vmatprep.subr.bf16.mxu0 0
        %615 = vmatpush1.bf16.msra.mxu0 0
        %616 = vmatprep.subr.bf16.mxu0 0
        %617 = vmatpush1.bf16.msra.mxu0 0
        %618 = vmatprep.subr.bf16.mxu0 0
        %619 = vmatpush1.bf16.msra.mxu0 0
        %620 = vmatprep.subr.bf16.mxu0 0
        %621 = vmatpush1.bf16.msra.mxu0 0
        %622 = vmatprep.subr.bf16.mxu0 0
        %623 = vmatpush1.bf16.msra.mxu0 0
        %624 = vmatprep.subr.bf16.mxu0 0
        %625 = vmatpush1.bf16.msra.mxu0 0
        %626 = vmatprep.subr.bf16.mxu0 0
        %627 = vmatpush1.bf16.msra.mxu0 0
        %628 = vmatprep.subr.bf16.mxu0 0
        %629 = vmatpush1.bf16.msra.mxu0 0
        %630 = vmatprep.subr.bf16.mxu0 0
        %631 = vmatpush1.bf16.msra.mxu0 0
        %632 = vmatprep.subr.bf16.mxu0 0
        %633 = vmatpush1.bf16.msra.mxu0 0
        %634 = vmatprep.subr.bf16.mxu0 0
        %635 = vmatpush1.bf16.msra.mxu0 0
        %636 = vmatprep.subr.bf16.mxu0 0
        %637 = vmatpush1.bf16.msra.mxu0 0
        %638 = vmatprep.subr.bf16.mxu0 0
        %639 = vmatpush1.bf16.msra.mxu0 0
        %640 = vmatprep.mubr.bf16.mxu0 0
        %641 = vmatmul.mubr.bf16.gmra.mrb[0].mxu0 %v606
        %v642 = vpop.f32.mrb[0].mxu0
        %v643 = vadd.f32 0.0, %v642
        %v644 = vpop.f32.mrb[0].mxu0
        %v645 = vadd.f32 0.0, %v644
        %v646 = vpop.f32.mrb[0].mxu0
        %v647 = vpop.f32.mrb[0].mxu0
        %648 = vdwg.mxu0
        %v649 = vpack.c.bf16 %v643, %v643
        %v650 = vpack.c.bf16 %v645, %v645
        %652 = vrot.lane.b32.xlu0 %v649, 64
        %v653 = vpop.permute.xlu0 %652
        %v655 = vsel %vm604, %v649, 0
        %v658 = vsel %vm604, %v653, 0
        %660 = vmatprep.subr.bf16.mxu0 0
        %661 = vmatpush1.bf16.xpose.msra.mxu0 %v658
        %662 = vmatprep.subr.bf16.mxu0 0
        %663 = vmatpush1.bf16.xpose.msra.mxu0 0
        %664 = vmatprep.subr.bf16.mxu0 0
        %665 = vmatpush1.bf16.xpose.msra.mxu0 0
        %666 = vmatprep.subr.bf16.mxu0 0
        %667 = vmatpush1.bf16.xpose.msra.mxu0 0
        %668 = vmatprep.subr.bf16.mxu0 0
        %669 = vmatpush1.bf16.xpose.msra.mxu0 0
        %670 = vmatprep.subr.bf16.mxu0 0
        %671 = vmatpush1.bf16.xpose.msra.mxu0 0
        %672 = vmatprep.subr.bf16.mxu0 0
        %673 = vmatpush1.bf16.xpose.msra.mxu0 0
        %674 = vmatprep.subr.bf16.mxu0 0
        %675 = vmatpush1.bf16.xpose.msra.mxu0 0
        %676 = vmatprep.subr.bf16.mxu0 0
        %677 = vmatpush1.bf16.xpose.msra.mxu0 0
        %678 = vmatprep.subr.bf16.mxu0 0
        %679 = vmatpush1.bf16.xpose.msra.mxu0 0
        %680 = vmatprep.subr.bf16.mxu0 0
        %681 = vmatpush1.bf16.xpose.msra.mxu0 0
        %682 = vmatprep.subr.bf16.mxu0 0
        %683 = vmatpush1.bf16.xpose.msra.mxu0 0
        %684 = vmatprep.subr.bf16.mxu0 0
        %685 = vmatpush1.bf16.xpose.msra.mxu0 0
        %686 = vmatprep.subr.bf16.mxu0 0
        %687 = vmatpush1.bf16.xpose.msra.mxu0 0
        %688 = vmatprep.subr.bf16.mxu0 0
        %689 = vmatpush1.bf16.xpose.msra.mxu0 0
        %690 = vmatprep.subr.bf16.mxu0 0
        %691 = vmatpush1.bf16.xpose.msra.mxu0 0
        %692 = vmatprep.mubr.bf16.mxu0 0
        %693 = vmatmul.mubr.bf16.gmra.mrb[0].mxu0 %v655
        %v694 = vpop.f32.mrb[0].mxu0
        %v695 = vadd.f32 0.0, %v694
        %v696 = vpop.f32.mrb[0].mxu0
        %v697 = vpop.f32.mrb[0].mxu0
        %v698 = vpop.f32.mrb[0].mxu0
        %699 = vdwg.mxu0
        %v700 = vmul.f32 %v695, 0.17677669
        %v701 = vadd.f32 %v700, %v574
        %vm702 = vcmask 64512
        %v703 = vsel %vm702, %v701, -inf
        %704 = vmax.xlane.f32.xlu0 %v703
        %v705 = vpop.xlane.xlu0 %704
        %v706 = vsub.f32 %v701, %v705
        %v707 = vmul.f32 %v706, 1.442695
        %v708 = vpow.pop %v707
        %v709 = vsel %vm702, %v708, 0.0
        %710 = vadd.xlane.f32.xlu0 %v709
        %v711 = vpop.xlane.xlu0 %710
        %v712 = vrcp.pop %v711
        %v713 = vmul.f32 %v708, %v712
        %v714 = vpack.c.bf16 %v713, %v713
        %v716 = vsel %vm702, %v714, 0
        %vm718 = vcmask 1043456
        %v720 = vsel %vm718, %v650, 0
        %722 = vmatprep.subr.bf16.mxu0 0
        %723 = vmatpush1.bf16.msra.mxu0 %v720
        %724 = vmatprep.subr.bf16.mxu0 0
        %725 = vmatpush1.bf16.msra.mxu0 0
        %726 = vmatprep.subr.bf16.mxu0 0
        %727 = vmatpush1.bf16.msra.mxu0 0
        %728 = vmatprep.subr.bf16.mxu0 0
        %729 = vmatpush1.bf16.msra.mxu0 0
        %730 = vmatprep.subr.bf16.mxu0 0
        %731 = vmatpush1.bf16.msra.mxu0 0
        %732 = vmatprep.subr.bf16.mxu0 0
        %733 = vmatpush1.bf16.msra.mxu0 0
        %734 = vmatprep.subr.bf16.mxu0 0
        %735 = vmatpush1.bf16.msra.mxu0 0
        %736 = vmatprep.subr.bf16.mxu0 0
        %737 = vmatpush1.bf16.msra.mxu0 0
        %738 = vmatprep.subr.bf16.mxu0 0
        %739 = vmatpush1.bf16.msra.mxu0 0
        %740 = vmatprep.subr.bf16.mxu0 0
        %741 = vmatpush1.bf16.msra.mxu0 0
        %742 = vmatprep.subr.bf16.mxu0 0
        %743 = vmatpush1.bf16.msra.mxu0 0
        %744 = vmatprep.subr.bf16.mxu0 0
        %745 = vmatpush1.bf16.msra.mxu0 0
        %746 = vmatprep.subr.bf16.mxu0 0
        %747 = vmatpush1.bf16.msra.mxu0 0
        %748 = vmatprep.subr.bf16.mxu0 0
        %749 = vmatpush1.bf16.msra.mxu0 0
        %750 = vmatprep.subr.bf16.mxu0 0
        %751 = vmatpush1.bf16.msra.mxu0 0
        %752 = vmatprep.subr.bf16.mxu0 0
        %753 = vmatpush1.bf16.msra.mxu0 0
        %754 = vmatprep.mubr.bf16.mxu0 0
        %755 = vmatmul.mubr.bf16.gmra.mrb[0].mxu0 %v716
        %v756 = vpop.f32.mrb[0].mxu0
        %v757 = vadd.f32 0.0, %v756
        %v758 = vpop.f32.mrb[0].mxu0
        %v759 = vpop.f32.mrb[0].mxu0
        %v760 = vpop.f32.mrb[0].mxu0
        %761 = vdwg.mxu0
        %762 = vrot.lane.b32.xlu0 %v649, 96
        %v763 = vpop.permute.xlu0 %762
        %764 = vrot.lane.b32.xlu0 %v649, 32
        %v765 = vpop.permute.xlu0 %764
        %v767 = vsel %vm604, %v763, 0
        %v770 = vsel %vm604, %v765, 0
        %772 = vmatprep.subr.bf16.mxu0 0
        %773 = vmatpush1.bf16.xpose.msra.mxu0 %v770
        %774 = vmatprep.subr.bf16.mxu0 0
        %775 = vmatpush1.bf16.xpose.msra.mxu0 0
        %776 = vmatprep.subr.bf16.mxu0 0
        %777 = vmatpush1.bf16.xpose.msra.mxu0 0
        %778 = vmatprep.subr.bf16.mxu0 0
        %779 = vmatpush1.bf16.xpose.msra.mxu0 0
        %780 = vmatprep.subr.bf16.mxu0 0
        %781 = vmatpush1.bf16.xpose.msra.mxu0 0
        %782 = vmatprep.subr.bf16.mxu0 0
        %783 = vmatpush1.bf16.xpose.msra.mxu0 0
        %784 = vmatprep.subr.bf16.mxu0 0
        %785 = vmatpush1.bf16.xpose.msra.mxu0 0
        %786 = vmatprep.subr.bf16.mxu0 0
        %787 = vmatpush1.bf16.xpose.msra.mxu0 0
        %788 = vmatprep.subr.bf16.mxu0 0
        %789 = vmatpush1.bf16.xpose.msra.mxu0 0
        %790 = vmatprep.subr.bf16.mxu0 0
        %791 = vmatpush1.bf16.xpose.msra.mxu0 0
        %792 = vmatprep.subr.bf16.mxu0 0
        %793 = vmatpush1.bf16.xpose.msra.mxu0 0
        %794 = vmatprep.subr.bf16.mxu0 0
        %795 = vmatpush1.bf16.xpose.msra.mxu0 0
        %796 = vmatprep.subr.bf16.mxu0 0
        %797 = vmatpush1.bf16.xpose.msra.mxu0 0
        %798 = vmatprep.subr.bf16.mxu0 0
        %799 = vmatpush1.bf16.xpose.msra.mxu0 0
        %800 = vmatprep.subr.bf16.mxu0 0
        %801 = vmatpush1.bf16.xpose.msra.mxu0 0
        %802 = vmatprep.subr.bf16.mxu0 0
        %803 = vmatpush1.bf16.xpose.msra.mxu0 0
        %804 = vmatprep.mubr.bf16.mxu0 0
        %805 = vmatmul.mubr.bf16.gmra.mrb[0].mxu0 %v767
        %v806 = vpop.f32.mrb[0].mxu0
        %v807 = vadd.f32 0.0, %v806
        %v808 = vpop.f32.mrb[0].mxu0
        %v809 = vpop.f32.mrb[0].mxu0
        %v810 = vpop.f32.mrb[0].mxu0
        %811 = vdwg.mxu0
        %v812 = vmul.f32 %v807, 0.17677669
        %v813 = vadd.f32 %v812, %v574
        %v814 = vsel %vm702, %v813, -inf
        %815 = vmax.xlane.f32.xlu0 %v814
        %v816 = vpop.xlane.xlu0 %815
        %v817 = vsub.f32 %v813, %v816
        %v818 = vmul.f32 %v817, 1.442695
        %v819 = vpow.pop %v818
        %v820 = vsel %vm702, %v819, 0.0
        %821 = vadd.xlane.f32.xlu0 %v820
        %v822 = vpop.xlane.xlu0 %821
        %v823 = vrcp.pop %v822
        %v824 = vmul.f32 %v819, %v823
        %v825 = vpack.c.bf16 %v824, %v824
        %827 = vrot.lane.b32.xlu0 %v650, 96
        %v828 = vpop.permute.xlu0 %827
        %v830 = vsel %vm702, %v825, 0
        %v833 = vsel %vm718, %v828, 0
        %835 = vmatprep.subr.bf16.mxu0 0
        %836 = vmatpush1.bf16.msra.mxu0 %v833
        %837 = vmatprep.subr.bf16.mxu0 0
        %838 = vmatpush1.bf16.msra.mxu0 0
        %839 = vmatprep.subr.bf16.mxu0 0
        %840 = vmatpush1.bf16.msra.mxu0 0
        %841 = vmatprep.subr.bf16.mxu0 0
        %842 = vmatpush1.bf16.msra.mxu0 0
        %843 = vmatprep.subr.bf16.mxu0 0
        %844 = vmatpush1.bf16.msra.mxu0 0
        %845 = vmatprep.subr.bf16.mxu0 0
        %846 = vmatpush1.bf16.msra.mxu0 0
        %847 = vmatprep.subr.bf16.mxu0 0
        %848 = vmatpush1.bf16.msra.mxu0 0
        %849 = vmatprep.subr.bf16.mxu0 0
        %850 = vmatpush1.bf16.msra.mxu0 0
        %851 = vmatprep.subr.bf16.mxu0 0
        %852 = vmatpush1.bf16.msra.mxu0 0
        %853 = vmatprep.subr.bf16.mxu0 0
        %854 = vmatpush1.bf16.msra.mxu0 0
        %855 = vmatprep.subr.bf16.mxu0 0
        %856 = vmatpush1.bf16.msra.mxu0 0
        %857 = vmatprep.subr.bf16.mxu0 0
        %858 = vmatpush1.bf16.msra.mxu0 0
        %859 = vmatprep.subr.bf16.mxu0 0
        %860 = vmatpush1.bf16.msra.mxu0 0
        %861 = vmatprep.subr.bf16.mxu0 0
        %862 = vmatpush1.bf16.msra.mxu0 0
        %863 = vmatprep.subr.bf16.mxu0 0
        %864 = vmatpush1.bf16.msra.mxu0 0
        %865 = vmatprep.subr.bf16.mxu0 0
        %866 = vmatpush1.bf16.msra.mxu0 0
        %867 = vmatprep.mubr.bf16.mxu0 0
        %868 = vmatmul.mubr.bf16.gmra.mrb[0].mxu0 %v830
        %v869 = vpop.f32.mrb[0].mxu0
        %v870 = vadd.f32 0.0, %v869
        %v871 = vpop.f32.mrb[0].mxu0
        %v872 = vpop.f32.mrb[0].mxu0
        %v873 = vpop.f32.mrb[0].mxu0
        %874 = vdwg.mxu0
        %876 = vrot.lane.b32.xlu0 %v870, 32
        %v877 = vpop.permute.xlu0 %876
        %v879 = vsel %vm604, %v757, %v877
        %v880 = vpack.c.bf16 %v879, %v879
        %v881 = vld [vmem:[%s4] sm:$0xf]
        %v882 = vld [vmem:[%s4 + $0x4] sm:$0xf]
        %v883 = vld [vmem:[%s4 + $0x8] sm:$0xf]
        %v884 = vld [vmem:[%s4 + $0xc] sm:$0xf]
        %v885 = vld [vmem:[%s4 + $0x10] sm:$0xf]
        %v886 = vld [vmem:[%s4 + $0x14] sm:$0xf]
        %v887 = vld [vmem:[%s4 + $0x18] sm:$0xf]
        %v888 = vld [vmem:[%s4 + $0x1c] sm:$0xf]
        %v897 = vunpack.c.l.b16 %v881
        %v898 = vunpack.c.l.b16 %v882
        %v899 = vunpack.c.l.b16 %v883
        %v900 = vunpack.c.l.b16 %v884
        %v901 = vunpack.c.l.b16 %v885
        %v902 = vunpack.c.l.b16 %v886
        %v903 = vunpack.c.l.b16 %v887
        %v904 = vunpack.c.l.b16 %v888
        %v905 = vpack.c.b16 %v898, %v897
        %v906 = vpack.c.b16 %v900, %v899
        %v907 = vpack.c.b16 %v902, %v901
        %v908 = vpack.c.b16 %v904, %v903
        %vm913 = vcmask 523264
        %v915 = vsel %vm913, %v880, 0
        %917 = vmatprep.subr.bf16.mxu0 0
        %918 = vmatpush1.bf16.msra.mxu0 %v905
        %919 = vmatprep.subr.bf16.mxu0 0
        %920 = vmatpush1.bf16.msra.mxu0 %v906
        %921 = vmatprep.subr.bf16.mxu0 0
        %922 = vmatpush1.bf16.msra.mxu0 %v907
        %923 = vmatprep.subr.bf16.mxu0 0
        %924 = vmatpush1.bf16.msra.mxu0 %v908
        %925 = vmatprep.subr.bf16.mxu0 0
        %926 = vmatpush1.bf16.msra.mxu0 0
        %927 = vmatprep.subr.bf16.mxu0 0
        %928 = vmatpush1.bf16.msra.mxu0 0
        %929 = vmatprep.subr.bf16.mxu0 0
        %930 = vmatpush1.bf16.msra.mxu0 0
        %931 = vmatprep.subr.bf16.mxu0 0
        %932 = vmatpush1.bf16.msra.mxu0 0
        %933 = vmatprep.subr.bf16.mxu0 0
        %934 = vmatpush1.bf16.msra.mxu0 0
        %935 = vmatprep.subr.bf16.mxu0 0
        %936 = vmatpush1.bf16.msra.mxu0 0
        %937 = vmatprep.subr.bf16.mxu0 0
        %938 = vmatpush1.bf16.msra.mxu0 0
        %939 = vmatprep.subr.bf16.mxu0 0
        %940 = vmatpush1.bf16.msra.mxu0 0
        %941 = vmatprep.subr.bf16.mxu0 0
        %942 = vmatpush1.bf16.msra.mxu0 0
        %943 = vmatprep.subr.bf16.mxu0 0
        %944 = vmatpush1.bf16.msra.mxu0 0
        %945 = vmatprep.subr.bf16.mxu0 0
        %946 = vmatpush1.bf16.msra.mxu0 0
        %947 = vmatprep.subr.bf16.mxu0 0
        %948 = vmatpush1.bf16.msra.mxu0 0
        %949 = vmatprep.mubr.bf16.mxu0 0
        %950 = vmatmul.mubr.bf16.gmra.mrb[0].mxu0 %v915
        %v951 = vpop.f32.mrb[0].mxu0
        %v952 = vadd.f32 0.0, %v951
        %v953 = vpop.f32.mrb[0].mxu0
        %v954 = vpop.f32.mrb[0].mxu0
        %v955 = vpop.f32.mrb[0].mxu0
        %956 = vdwg.mxu0
        %v957 = vadd.f32 %v567, %v952
        %v958 = vld [vmem:[%s8] sm:$0x1]
        %v959 = vld [vmem:[%s9] sm:$0x1]
        %v960 = vsel %vm604, %v957, 0.0
        %961 = vadd.xlane.f32.xlu0 %v960
        %v962 = vpop.xlane.xlu0 %961
        %v963 = vrcp.pop 32.0
        %v964 = vmul.f32 %v962, %v963
        %v965 = vsub.f32 %v957, %v964
        %v966 = vmul.f32 %v965, %v965
        %v967 = vsel %vm604, %v966, 0.0
        %968 = vadd.xlane.f32.xlu0 %v967
        %v969 = vpop.xlane.xlu0 %968
        %v970 = vmul.f32 %v969, %v963
        %v971 = vadd.f32 %v970, 1e-05
        %v972 = vrsqrt.pop %v971
        %v973 = vmul.f32 %v965, %v972
        %v975 = vlaneseq
        %v976 = vshrl.u32 %v975, 7
        %v977 = vsub.s32 0, %v976
        %v978 = vrot.slane %v958, %v977
        %v980 = vmul.f32 %v973, %v978
        %v982 = vlaneseq
        %v983 = vshrl.u32 %v982, 7
        %v984 = vsub.s32 0, %v983
        %v985 = vrot.slane %v959, %v984
        %v987 = vadd.f32 %v980, %v985
        %v988 = vpack.c.bf16 %v987, %v987
        %v989 = vld [vmem:[%s5] sm:$0xf]
        %v990 = vld [vmem:[%s5 + $0x4] sm:$0xf]
        %v991 = vld [vmem:[%s5 + $0x8] sm:$0xf]
        %v992 = vld [vmem:[%s5 + $0xc] sm:$0xf]
        %v997 = vunpack.c.l.b16 %v989
        %v998 = vunpack.c.l.b16 %v990
        %v999 = vunpack.c.l.b16 %v991
        %v1000 = vunpack.c.l.b16 %v992
        %v1001 = vpack.c.b16 %v998, %v997
        %v1002 = vpack.c.b16 %v1000, %v999
        %v1006 = vsel %vm604, %v988, 0
        %1008 = vmatprep.subr.bf16.mxu0 0
        %1009 = vmatpush1.bf16.msra.mxu0 %v1001
        %1010 = vmatprep.subr.bf16.mxu0 0
        %1011 = vmatpush1.bf16.msra.mxu0 %v1002
        %1012 = vmatprep.subr.bf16.mxu0 0
        %1013 = vmatpush1.bf16.msra.mxu0 0
        %1014 = vmatprep.subr.bf16.mxu0 0
        %1015 = vmatpush1.bf16.msra.mxu0 0
        %1016 = vmatprep.subr.bf16.mxu0 0
        %1017 = vmatpush1.bf16.msra.mxu0 0
        %1018 = vmatprep.subr.bf16.mxu0 0
        %1019 = vmatpush1.bf16.msra.mxu0 0
        %1020 = vmatprep.subr.bf16.mxu0 0
        %1021 = vmatpush1.bf16.msra.mxu0 0
        %1022 = vmatprep.subr.bf16.mxu0 0
        %1023 = vmatpush1.bf16.msra.mxu0 0
        %1024 = vmatprep.subr.bf16.mxu0 0
        %1025 = vmatpush1.bf16.msra.mxu0 0
        %1026 = vmatprep.subr.bf16.mxu0 0
        %1027 = vmatpush1.bf16.msra.mxu0 0
        %1028 = vmatprep.subr.bf16.mxu0 0
        %1029 = vmatpush1.bf16.msra.mxu0 0
        %1030 = vmatprep.subr.bf16.mxu0 0
        %1031 = vmatpush1.bf16.msra.mxu0 0
        %1032 = vmatprep.subr.bf16.mxu0 0
        %1033 = vmatpush1.bf16.msra.mxu0 0
        %1034 = vmatprep.subr.bf16.mxu0 0
        %1035 = vmatpush1.bf16.msra.mxu0 0
        %1036 = vmatprep.subr.bf16.mxu0 0
        %1037 = vmatpush1.bf16.msra.mxu0 0
        %1038 = vmatprep.subr.bf16.mxu0 0
        %1039 = vmatpush1.bf16.msra.mxu0 0
        %1040 = vmatprep.mubr.bf16.mxu0 0
        %1041 = vmatmul.mubr.bf16.gmra.mrb[0].mxu0 %v1006
        %v1042 = vpop.f32.mrb[0].mxu0
        %v1043 = vadd.f32 0.0, %v1042
        %v1044 = vpop.f32.mrb[0].mxu0
        %v1045 = vpop.f32.mrb[0].mxu0
        %v1046 = vpop.f32.mrb[0].mxu0
        %1047 = vdwg.mxu0
        %v1048 = vpack.c.bf16 %v568, %v568
        %v1049 = vld [vmem:[%s6] sm:$0xf]
        %v1050 = vld [vmem:[%s6 + $0x4] sm:$0xf]
        %v1051 = vld [vmem:[%s6 + $0x8] sm:$0xf]
        %v1052 = vld [vmem:[%s6 + $0xc] sm:$0xf]
        %v1057 = vunpack.c.l.b16 %v1049
        %v1058 = vunpack.c.l.b16 %v1050
        %v1059 = vunpack.c.l.b16 %v1051
        %v1060 = vunpack.c.l.b16 %v1052
        %v1061 = vpack.c.b16 %v1058, %v1057
        %v1062 = vpack.c.b16 %v1060, %v1059
        %v1066 = vsel %vm604, %v1048, 0
        %1068 = vmatprep.subr.bf16.mxu0 0
        %1069 = vmatpush1.bf16.msra.mxu0 %v1061
        %1070 = vmatprep.subr.bf16.mxu0 0
        %1071 = vmatpush1.bf16.msra.mxu0 %v1062
        %1072 = vmatprep.subr.bf16.mxu0 0
        %1073 = vmatpush1.bf16.msra.mxu0 0
        %1074 = vmatprep.subr.bf16.mxu0 0
        %1075 = vmatpush1.bf16.msra.mxu0 0
        %1076 = vmatprep.subr.bf16.mxu0 0
        %1077 = vmatpush1.bf16.msra.mxu0 0
        %1078 = vmatprep.subr.bf16.mxu0 0
        %1079 = vmatpush1.bf16.msra.mxu0 0
        %1080 = vmatprep.subr.bf16.mxu0 0
        %1081 = vmatpush1.bf16.msra.mxu0 0
        %1082 = vmatprep.subr.bf16.mxu0 0
        %1083 = vmatpush1.bf16.msra.mxu0 0
        %1084 = vmatprep.subr.bf16.mxu0 0
        %1085 = vmatpush1.bf16.msra.mxu0 0
        %1086 = vmatprep.subr.bf16.mxu0 0
        %1087 = vmatpush1.bf16.msra.mxu0 0
        %1088 = vmatprep.subr.bf16.mxu0 0
        %1089 = vmatpush1.bf16.msra.mxu0 0
        %1090 = vmatprep.subr.bf16.mxu0 0
        %1091 = vmatpush1.bf16.msra.mxu0 0
        %1092 = vmatprep.subr.bf16.mxu0 0
        %1093 = vmatpush1.bf16.msra.mxu0 0
        %1094 = vmatprep.subr.bf16.mxu0 0
        %1095 = vmatpush1.bf16.msra.mxu0 0
        %1096 = vmatprep.subr.bf16.mxu0 0
        %1097 = vmatpush1.bf16.msra.mxu0 0
        %1098 = vmatprep.subr.bf16.mxu0 0
        %1099 = vmatpush1.bf16.msra.mxu0 0
        %1100 = vmatprep.mubr.bf16.mxu0 0
        %1101 = vmatmul.mubr.bf16.gmra.mrb[0].mxu0 %v1066
        %v1102 = vpop.f32.mrb[0].mxu0
        %v1103 = vadd.f32 0.0, %v1102
        %v1104 = vpop.f32.mrb[0].mxu0
        %v1105 = vpop.f32.mrb[0].mxu0
        %v1106 = vpop.f32.mrb[0].mxu0
        %1107 = vdwg.mxu0
        %v1108 = vpack.c.bf16 %v1043, %v1043
        %v1109 = vpack.c.bf16 %v1103, %v1103
        %v1111 = vsel %vm604, %v1108, 0
        %v1114 = vsel %vm604, %v1109, 0
        %1116 = vmatprep.subr.bf16.mxu0 0
        %1117 = vmatpush1.bf16.xpose.msra.mxu0 %v1114
        %1118 = vmatprep.subr.bf16.mxu0 0
        %1119 = vmatpush1.bf16.xpose.msra.mxu0 0
        %1120 = vmatprep.subr.bf16.mxu0 0
        %1121 = vmatpush1.bf16.xpose.msra.mxu0 0
        %1122 = vmatprep.subr.bf16.mxu0 0
        %1123 = vmatpush1.bf16.xpose.msra.mxu0 0
        %1124 = vmatprep.subr.bf16.mxu0 0
        %1125 = vmatpush1.bf16.xpose.msra.mxu0 0
        %1126 = vmatprep.subr.bf16.mxu0 0
        %1127 = vmatpush1.bf16.xpose.msra.mxu0 0
        %1128 = vmatprep.subr.bf16.mxu0 0
        %1129 = vmatpush1.bf16.xpose.msra.mxu0 0
        %1130 = vmatprep.subr.bf16.mxu0 0
        %1131 = vmatpush1.bf16.xpose.msra.mxu0 0
        %1132 = vmatprep.subr.bf16.mxu0 0
        %1133 = vmatpush1.bf16.xpose.msra.mxu0 0
        %1134 = vmatprep.subr.bf16.mxu0 0
        %1135 = vmatpush1.bf16.xpose.msra.mxu0 0
        %1136 = vmatprep.subr.bf16.mxu0 0
        %1137 = vmatpush1.bf16.xpose.msra.mxu0 0
        %1138 = vmatprep.subr.bf16.mxu0 0
        %1139 = vmatpush1.bf16.xpose.msra.mxu0 0
        %1140 = vmatprep.subr.bf16.mxu0 0
        %1141 = vmatpush1.bf16.xpose.msra.mxu0 0
        %1142 = vmatprep.subr.bf16.mxu0 0
        %1143 = vmatpush1.bf16.xpose.msra.mxu0 0
        %1144 = vmatprep.subr.bf16.mxu0 0
        %1145 = vmatpush1.bf16.xpose.msra.mxu0 0
        %1146 = vmatprep.subr.bf16.mxu0 0
        %1147 = vmatpush1.bf16.xpose.msra.mxu0 0
        %1148 = vmatprep.mubr.bf16.mxu0 0
        %1149 = vmatmul.mubr.bf16.gmra.mrb[0].mxu0 %v1111
        %v1150 = vpop.f32.mrb[0].mxu0
        %v1151 = vadd.f32 0.0, %v1150
        %v1152 = vpop.f32.mrb[0].mxu0
        %v1153 = vpop.f32.mrb[0].mxu0
        %v1154 = vpop.f32.mrb[0].mxu0
        %1155 = vdwg.mxu0
        %v1156 = vmul.f32 %v1151, 0.17677669
        %v1157 = vadd.f32 %v1156, %v578
        %v1158 = vsel %vm702, %v1157, -inf
        %1159 = vmax.xlane.f32.xlu0 %v1158
        %v1160 = vpop.xlane.xlu0 %1159
        %v1161 = vsub.f32 %v1157, %v1160
        %v1162 = vmul.f32 %v1161, 1.442695
        %v1163 = vpow.pop %v1162
        %v1164 = vsel %vm702, %v1163, 0.0
        %1165 = vadd.xlane.f32.xlu0 %v1164
        %v1166 = vpop.xlane.xlu0 %1165
        %v1167 = vrcp.pop %v1166
        %v1168 = vmul.f32 %v1163, %v1167
        %v1169 = vpack.c.bf16 %v1168, %v1168
        %1171 = vrot.lane.b32.xlu0 %v1109, 64
        %v1172 = vpop.permute.xlu0 %1171
        %v1174 = vsel %vm702, %v1169, 0
        %v1177 = vsel %vm718, %v1172, 0
        %1179 = vmatprep.subr.bf16.mxu0 0
        %1180 = vmatpush1.bf16.msra.mxu0 %v1177
        %1181 = vmatprep.subr.bf16.mxu0 0
        %1182 = vmatpush1.bf16.msra.mxu0 0
        %1183 = vmatprep.subr.bf16.mxu0 0
        %1184 = vmatpush1.bf16.msra.mxu0 0
        %1185 = vmatprep.subr.bf16.mxu0 0
        %1186 = vmatpush1.bf16.msra.mxu0 0
        %1187 = vmatprep.subr.bf16.mxu0 0
        %1188 = vmatpush1.bf16.msra.mxu0 0
        %1189 = vmatprep.subr.bf16.mxu0 0
        %1190 = vmatpush1.bf16.msra.mxu0 0
        %1191 = vmatprep.subr.bf16.mxu0 0
        %1192 = vmatpush1.bf16.msra.mxu0 0
        %1193 = vmatprep.subr.bf16.mxu0 0
        %1194 = vmatpush1.bf16.msra.mxu0 0
        %1195 = vmatprep.subr.bf16.mxu0 0
        %1196 = vmatpush1.bf16.msra.mxu0 0
        %1197 = vmatprep.subr.bf16.mxu0 0
        %1198 = vmatpush1.bf16.msra.mxu0 0
        %1199 = vmatprep.subr.bf16.mxu0 0
        %1200 = vmatpush1.bf16.msra.mxu0 0
        %1201 = vmatprep.subr.bf16.mxu0 0
        %1202 = vmatpush1.bf16.msra.mxu0 0
        %1203 = vmatprep.subr.bf16.mxu0 0
        %1204 = vmatpush1.bf16.msra.mxu0 0
        %1205 = vmatprep.subr.bf16.mxu0 0
        %1206 = vmatpush1.bf16.msra.mxu0 0
        %1207 = vmatprep.subr.bf16.mxu0 0
        %1208 = vmatpush1.bf16.msra.mxu0 0
        %1209 = vmatprep.subr.bf16.mxu0 0
        %1210 = vmatpush1.bf16.msra.mxu0 0
        %1211 = vmatprep.mubr.bf16.mxu0 0
        %1212 = vmatmul.mubr.bf16.gmra.mrb[0].mxu0 %v1174
        %v1213 = vpop.f32.mrb[0].mxu0
        %v1214 = vadd.f32 0.0, %v1213
        %v1215 = vpop.f32.mrb[0].mxu0
        %v1216 = vpop.f32.mrb[0].mxu0
        %v1217 = vpop.f32.mrb[0].mxu0
        %1218 = vdwg.mxu0
        %1220 = vrot.lane.b32.xlu0 %v1108, 96
        %v1221 = vpop.permute.xlu0 %1220
        %1222 = vrot.lane.b32.xlu0 %v1109, 96
        %v1223 = vpop.permute.xlu0 %1222
        %v1225 = vsel %vm604, %v1221, 0
        %v1228 = vsel %vm604, %v1223, 0
        %1230 = vmatprep.subr.bf16.mxu0 0
        %1231 = vmatpush1.bf16.xpose.msra.mxu0 %v1228
        %1232 = vmatprep.subr.bf16.mxu0 0
        %1233 = vmatpush1.bf16.xpose.msra.mxu0 0
        %1234 = vmatprep.subr.bf16.mxu0 0
        %1235 = vmatpush1.bf16.xpose.msra.mxu0 0
        %1236 = vmatprep.subr.bf16.mxu0 0
        %1237 = vmatpush1.bf16.xpose.msra.mxu0 0
        %1238 = vmatprep.subr.bf16.mxu0 0
        %1239 = vmatpush1.bf16.xpose.msra.mxu0 0
        %1240 = vmatprep.subr.bf16.mxu0 0
        %1241 = vmatpush1.bf16.xpose.msra.mxu0 0
        %1242 = vmatprep.subr.bf16.mxu0 0
        %1243 = vmatpush1.bf16.xpose.msra.mxu0 0
        %1244 = vmatprep.subr.bf16.mxu0 0
        %1245 = vmatpush1.bf16.xpose.msra.mxu0 0
        %1246 = vmatprep.subr.bf16.mxu0 0
        %1247 = vmatpush1.bf16.xpose.msra.mxu0 0
        %1248 = vmatprep.subr.bf16.mxu0 0
        %1249 = vmatpush1.bf16.xpose.msra.mxu0 0
        %1250 = vmatprep.subr.bf16.mxu0 0
        %1251 = vmatpush1.bf16.xpose.msra.mxu0 0
        %1252 = vmatprep.subr.bf16.mxu0 0
        %1253 = vmatpush1.bf16.xpose.msra.mxu0 0
        %1254 = vmatprep.subr.bf16.mxu0 0
        %1255 = vmatpush1.bf16.xpose.msra.mxu0 0
        %1256 = vmatprep.subr.bf16.mxu0 0
        %1257 = vmatpush1.bf16.xpose.msra.mxu0 0
        %1258 = vmatprep.subr.bf16.mxu0 0
        %1259 = vmatpush1.bf16.xpose.msra.mxu0 0
        %1260 = vmatprep.subr.bf16.mxu0 0
        %1261 = vmatpush1.bf16.xpose.msra.mxu0 0
        %1262 = vmatprep.mubr.bf16.mxu0 0
        %1263 = vmatmul.mubr.bf16.gmra.mrb[0].mxu0 %v1225
        %v1264 = vpop.f32.mrb[0].mxu0
        %v1265 = vadd.f32 0.0, %v1264
        %v1266 = vpop.f32.mrb[0].mxu0
        %v1267 = vpop.f32.mrb[0].mxu0
        %v1268 = vpop.f32.mrb[0].mxu0
        %1269 = vdwg.mxu0
        %v1270 = vmul.f32 %v1265, 0.17677669
        %v1271 = vadd.f32 %v1270, %v578
        %v1272 = vsel %vm702, %v1271, -inf
        %1273 = vmax.xlane.f32.xlu0 %v1272
        %v1274 = vpop.xlane.xlu0 %1273
        %v1275 = vsub.f32 %v1271, %v1274
        %v1276 = vmul.f32 %v1275, 1.442695
        %v1277 = vpow.pop %v1276
        %v1278 = vsel %vm702, %v1277, 0.0
        %1279 = vadd.xlane.f32.xlu0 %v1278
        %v1280 = vpop.xlane.xlu0 %1279
        %v1281 = vrcp.pop %v1280
        %v1282 = vmul.f32 %v1277, %v1281
        %v1283 = vpack.c.bf16 %v1282, %v1282
        %1284 = vrot.lane.b32.xlu0 %v1109, 32
        %v1285 = vpop.permute.xlu0 %1284
        %v1287 = vsel %vm702, %v1283, 0
        %v1290 = vsel %vm718, %v1285, 0
        %1292 = vmatprep.subr.bf16.mxu0 0
        %1293 = vmatpush1.bf16.msra.mxu0 %v1290
        %1294 = vmatprep.subr.bf16.mxu0 0
        %1295 = vmatpush1.bf16.msra.mxu0 0
        %1296 = vmatprep.subr.bf16.mxu0 0
        %1297 = vmatpush1.bf16.msra.mxu0 0
        %1298 = vmatprep.subr.bf16.mxu0 0
        %1299 = vmatpush1.bf16.msra.mxu0 0
        %1300 = vmatprep.subr.bf16.mxu0 0
        %1301 = vmatpush1.bf16.msra.mxu0 0
        %1302 = vmatprep.subr.bf16.mxu0 0
        %1303 = vmatpush1.bf16.msra.mxu0 0
        %1304 = vmatprep.subr.bf16.mxu0 0
        %1305 = vmatpush1.bf16.msra.mxu0 0
        %1306 = vmatprep.subr.bf16.mxu0 0
        %1307 = vmatpush1.bf16.msra.mxu0 0
        %1308 = vmatprep.subr.bf16.mxu0 0
        %1309 = vmatpush1.bf16.msra.mxu0 0
        %1310 = vmatprep.subr.bf16.mxu0 0
        %1311 = vmatpush1.bf16.msra.mxu0 0
        %1312 = vmatprep.subr.bf16.mxu0 0
        %1313 = vmatpush1.bf16.msra.mxu0 0
        %1314 = vmatprep.subr.bf16.mxu0 0
        %1315 = vmatpush1.bf16.msra.mxu0 0
        %1316 = vmatprep.subr.bf16.mxu0 0
        %1317 = vmatpush1.bf16.msra.mxu0 0
        %1318 = vmatprep.subr.bf16.mxu0 0
        %1319 = vmatpush1.bf16.msra.mxu0 0
        %1320 = vmatprep.subr.bf16.mxu0 0
        %1321 = vmatpush1.bf16.msra.mxu0 0
        %1322 = vmatprep.subr.bf16.mxu0 0
        %1323 = vmatpush1.bf16.msra.mxu0 0
        %1324 = vmatprep.mubr.bf16.mxu0 0
        %1325 = vmatmul.mubr.bf16.gmra.mrb[0].mxu0 %v1287
        %v1326 = vpop.f32.mrb[0].mxu0
        %v1327 = vadd.f32 0.0, %v1326
        %v1328 = vpop.f32.mrb[0].mxu0
        %v1329 = vpop.f32.mrb[0].mxu0
        %v1330 = vpop.f32.mrb[0].mxu0
        %1331 = vdwg.mxu0
        %1333 = vrot.lane.b32.xlu0 %v1327, 32
        %v1334 = vpop.permute.xlu0 %1333
        %v1336 = vsel %vm604, %v1214, %v1334
        %v1337 = vpack.c.bf16 %v1336, %v1336
        %v1338 = vld [vmem:[%s7] sm:$0xf]
        %v1339 = vld [vmem:[%s7 + $0x4] sm:$0xf]
        %v1340 = vld [vmem:[%s7 + $0x8] sm:$0xf]
        %v1341 = vld [vmem:[%s7 + $0xc] sm:$0xf]
        %v1342 = vld [vmem:[%s7 + $0x10] sm:$0xf]
        %v1343 = vld [vmem:[%s7 + $0x14] sm:$0xf]
        %v1344 = vld [vmem:[%s7 + $0x18] sm:$0xf]
        %v1345 = vld [vmem:[%s7 + $0x1c] sm:$0xf]
        %v1354 = vunpack.c.l.b16 %v1338
        %v1355 = vunpack.c.l.b16 %v1339
        %v1356 = vunpack.c.l.b16 %v1340
        %v1357 = vunpack.c.l.b16 %v1341
        %v1358 = vunpack.c.l.b16 %v1342
        %v1359 = vunpack.c.l.b16 %v1343
        %v1360 = vunpack.c.l.b16 %v1344
        %v1361 = vunpack.c.l.b16 %v1345
        %v1362 = vpack.c.b16 %v1355, %v1354
        %v1363 = vpack.c.b16 %v1357, %v1356
        %v1364 = vpack.c.b16 %v1359, %v1358
        %v1365 = vpack.c.b16 %v1361, %v1360
        %v1371 = vsel %vm913, %v1337, 0
        %1373 = vmatprep.subr.bf16.mxu0 0
        %1374 = vmatpush1.bf16.msra.mxu0 %v1362
        %1375 = vmatprep.subr.bf16.mxu0 0
        %1376 = vmatpush1.bf16.msra.mxu0 %v1363
        %1377 = vmatprep.subr.bf16.mxu0 0
        %1378 = vmatpush1.bf16.msra.mxu0 %v1364
        %1379 = vmatprep.subr.bf16.mxu0 0
        %1380 = vmatpush1.bf16.msra.mxu0 %v1365
        %1381 = vmatprep.subr.bf16.mxu0 0
        %1382 = vmatpush1.bf16.msra.mxu0 0
        %1383 = vmatprep.subr.bf16.mxu0 0
        %1384 = vmatpush1.bf16.msra.mxu0 0
        %1385 = vmatprep.subr.bf16.mxu0 0
        %1386 = vmatpush1.bf16.msra.mxu0 0
        %1387 = vmatprep.subr.bf16.mxu0 0
        %1388 = vmatpush1.bf16.msra.mxu0 0
        %1389 = vmatprep.subr.bf16.mxu0 0
        %1390 = vmatpush1.bf16.msra.mxu0 0
        %1391 = vmatprep.subr.bf16.mxu0 0
        %1392 = vmatpush1.bf16.msra.mxu0 0
        %1393 = vmatprep.subr.bf16.mxu0 0
        %1394 = vmatpush1.bf16.msra.mxu0 0
        %1395 = vmatprep.subr.bf16.mxu0 0
        %1396 = vmatpush1.bf16.msra.mxu0 0
        %1397 = vmatprep.subr.bf16.mxu0 0
        %1398 = vmatpush1.bf16.msra.mxu0 0
        %1399 = vmatprep.subr.bf16.mxu0 0
        %1400 = vmatpush1.bf16.msra.mxu0 0
        %1401 = vmatprep.subr.bf16.mxu0 0
        %1402 = vmatpush1.bf16.msra.mxu0 0
        %1403 = vmatprep.subr.bf16.mxu0 0
        %1404 = vmatpush1.bf16.msra.mxu0 0
        %1405 = vmatprep.mubr.bf16.mxu0 0
        %1406 = vmatmul.mubr.bf16.gmra.mrb[0].mxu0 %v1371
        %v1407 = vpop.f32.mrb[0].mxu0
        %v1408 = vadd.f32 0.0, %v1407
        %v1409 = vpop.f32.mrb[0].mxu0
        %v1410 = vpop.f32.mrb[0].mxu0
        %v1411 = vpop.f32.mrb[0].mxu0
        %1412 = vdwg.mxu0
        %v1413 = vadd.f32 %v987, %v1408
        %v1414 = vld [vmem:[%s10] sm:$0x1]
        %v1415 = vld [vmem:[%s11] sm:$0x1]
        %v1416 = vsel %vm604, %v1413, 0.0
        %1417 = vadd.xlane.f32.xlu0 %v1416
        %v1418 = vpop.xlane.xlu0 %1417
        %v1419 = vmul.f32 %v1418, %v963
        %v1420 = vsub.f32 %v1413, %v1419
        %v1421 = vmul.f32 %v1420, %v1420
        %v1422 = vsel %vm604, %v1421, 0.0
        %1423 = vadd.xlane.f32.xlu0 %v1422
        %v1424 = vpop.xlane.xlu0 %1423
        %v1425 = vmul.f32 %v1424, %v963
        %v1426 = vadd.f32 %v1425, 1e-05
        %v1427 = vrsqrt.pop %v1426
        %v1428 = vmul.f32 %v1420, %v1427
        %v1430 = vlaneseq
        %v1431 = vshrl.u32 %v1430, 7
        %v1432 = vsub.s32 0, %v1431
        %v1433 = vrot.slane %v1414, %v1432
        %v1435 = vmul.f32 %v1428, %v1433
        %v1437 = vlaneseq
        %v1438 = vshrl.u32 %v1437, 7
        %v1439 = vsub.s32 0, %v1438
        %v1440 = vrot.slane %v1415, %v1439
        %v1442 = vadd.f32 %v1435, %v1440
        %v1443 = vpack.c.bf16 %v1442, %v1442
        %v1444 = vld [vmem:[%s14] sm:$0xf]
        %v1445 = vld [vmem:[%s14 + $0x4] sm:$0xf]
        %v1446 = vld [vmem:[%s14 + $0x8] sm:$0xf]
        %v1447 = vld [vmem:[%s14 + $0xc] sm:$0xf]
        %v1448 = vld [vmem:[%s15] sm:$0x1]
        %v1450 = vlaneseq
        %v1451 = vshrl.u32 %v1450, 7
        %v1452 = vsub.s32 0, %v1451
        %v1453 = vrot.slane %v1448, %v1452
        %v1459 = vunpack.c.l.b16 %v1444
        %v1460 = vunpack.c.l.b16 %v1445
        %v1461 = vunpack.c.l.b16 %v1446
        %v1462 = vunpack.c.l.b16 %v1447
        %v1463 = vpack.c.b16 %v1460, %v1459
        %v1464 = vpack.c.b16 %v1462, %v1461
        %v1468 = vsel %vm604, %v1443, 0
        %1470 = vmatprep.subr.bf16.mxu0 0
        %1471 = vmatpush1.bf16.msra.mxu0 %v1463
        %1472 = vmatprep.subr.bf16.mxu0 0
        %1473 = vmatpush1.bf16.msra.mxu0 %v1464
        %1474 = vmatprep.subr.bf16.mxu0 0
        %1475 = vmatpush1.bf16.msra.mxu0 0
        %1476 = vmatprep.subr.bf16.mxu0 0
        %1477 = vmatpush1.bf16.msra.mxu0 0
        %1478 = vmatprep.subr.bf16.mxu0 0
        %1479 = vmatpush1.bf16.msra.mxu0 0
        %1480 = vmatprep.subr.bf16.mxu0 0
        %1481 = vmatpush1.bf16.msra.mxu0 0
        %1482 = vmatprep.subr.bf16.mxu0 0
        %1483 = vmatpush1.bf16.msra.mxu0 0
        %1484 = vmatprep.subr.bf16.mxu0 0
        %1485 = vmatpush1.bf16.msra.mxu0 0
        %1486 = vmatprep.subr.bf16.mxu0 0
        %1487 = vmatpush1.bf16.msra.mxu0 0
        %1488 = vmatprep.subr.bf16.mxu0 0
        %1489 = vmatpush1.bf16.msra.mxu0 0
        %1490 = vmatprep.subr.bf16.mxu0 0
        %1491 = vmatpush1.bf16.msra.mxu0 0
        %1492 = vmatprep.subr.bf16.mxu0 0
        %1493 = vmatpush1.bf16.msra.mxu0 0
        %1494 = vmatprep.subr.bf16.mxu0 0
        %1495 = vmatpush1.bf16.msra.mxu0 0
        %1496 = vmatprep.subr.bf16.mxu0 0
        %1497 = vmatpush1.bf16.msra.mxu0 0
        %1498 = vmatprep.subr.bf16.mxu0 0
        %1499 = vmatpush1.bf16.msra.mxu0 0
        %1500 = vmatprep.subr.bf16.mxu0 0
        %1501 = vmatpush1.bf16.msra.mxu0 0
        %1502 = vmatprep.mubr.bf16.mxu0 0
        %1503 = vmatmul.mubr.bf16.gmra.mrb[0].mxu0 %v1468
        %v1504 = vpop.f32.mrb[0].mxu0
        %v1505 = vadd.f32 %v1453, %v1504
        %v1506 = vpop.f32.mrb[0].mxu0
        %v1507 = vpop.f32.mrb[0].mxu0
        %v1508 = vpop.f32.mrb[0].mxu0
        %1509 = vdwg.mxu0
        %v1510 = vmax.f32 %v1505, 0.0
        %v1511 = vpack.c.bf16 %v1510, %v1510
        %v1512 = vld [vmem:[%s16] sm:$0xf]
        %v1513 = vld [vmem:[%s16 + $0x4] sm:$0xf]
        %v1514 = vld [vmem:[%s16 + $0x8] sm:$0xf]
        %v1515 = vld [vmem:[%s16 + $0xc] sm:$0xf]
        %v1516 = vld [vmem:[%s16 + $0x10] sm:$0xf]
        %v1517 = vld [vmem:[%s16 + $0x14] sm:$0xf]
        %v1518 = vld [vmem:[%s16 + $0x18] sm:$0xf]
        %v1519 = vld [vmem:[%s16 + $0x1c] sm:$0xf]
        %v1520 = vld [vmem:[%s17] sm:$0x1]
        %v1522 = vlaneseq
        %v1523 = vshrl.u32 %v1522, 7
        %v1524 = vsub.s32 0, %v1523
        %v1525 = vrot.slane %v1520, %v1524
        %v1535 = vunpack.c.l.b16 %v1512
        %v1536 = vunpack.c.l.b16 %v1513
        %v1537 = vunpack.c.l.b16 %v1514
        %v1538 = vunpack.c.l.b16 %v1515
        %v1539 = vunpack.c.l.b16 %v1516
        %v1540 = vunpack.c.l.b16 %v1517
        %v1541 = vunpack.c.l.b16 %v1518
        %v1542 = vunpack.c.l.b16 %v1519
        %v1543 = vpack.c.b16 %v1536, %v1535
        %v1544 = vpack.c.b16 %v1538, %v1537
        %v1545 = vpack.c.b16 %v1540, %v1539
        %v1546 = vpack.c.b16 %v1542, %v1541
        %v1552 = vsel %vm913, %v1511, 0
        %1554 = vmatprep.subr.bf16.mxu0 0
        %1555 = vmatpush1.bf16.msra.mxu0 %v1543
        %1556 = vmatprep.subr.bf16.mxu0 0
        %1557 = vmatpush1.bf16.msra.mxu0 %v1544
        %1558 = vmatprep.subr.bf16.mxu0 0
        %1559 = vmatpush1.bf16.msra.mxu0 %v1545
        %1560 = vmatprep.subr.bf16.mxu0 0
        %1561 = vmatpush1.bf16.msra.mxu0 %v1546
        %1562 = vmatprep.subr.bf16.mxu0 0
        %1563 = vmatpush1.bf16.msra.mxu0 0
        %1564 = vmatprep.subr.bf16.mxu0 0
        %1565 = vmatpush1.bf16.msra.mxu0 0
        %1566 = vmatprep.subr.bf16.mxu0 0
        %1567 = vmatpush1.bf16.msra.mxu0 0
        %1568 = vmatprep.subr.bf16.mxu0 0
        %1569 = vmatpush1.bf16.msra.mxu0 0
        %1570 = vmatprep.subr.bf16.mxu0 0
        %1571 = vmatpush1.bf16.msra.mxu0 0
        %1572 = vmatprep.subr.bf16.mxu0 0
        %1573 = vmatpush1.bf16.msra.mxu0 0
        %1574 = vmatprep.subr.bf16.mxu0 0
        %1575 = vmatpush1.bf16.msra.mxu0 0
        %1576 = vmatprep.subr.bf16.mxu0 0
        %1577 = vmatpush1.bf16.msra.mxu0 0
        %1578 = vmatprep.subr.bf16.mxu0 0
        %1579 = vmatpush1.bf16.msra.mxu0 0
        %1580 = vmatprep.subr.bf16.mxu0 0
        %1581 = vmatpush1.bf16.msra.mxu0 0
        %1582 = vmatprep.subr.bf16.mxu0 0
        %1583 = vmatpush1.bf16.msra.mxu0 0
        %1584 = vmatprep.subr.bf16.mxu0 0
        %1585 = vmatpush1.bf16.msra.mxu0 0
        %1586 = vmatprep.mubr.bf16.mxu0 0
        %1587 = vmatmul.mubr.bf16.gmra.mrb[0].mxu0 %v1552
        %v1588 = vpop.f32.mrb[0].mxu0
        %v1589 = vadd.f32 %v1525, %v1588
        %v1590 = vpop.f32.mrb[0].mxu0
        %v1591 = vpop.f32.mrb[0].mxu0
        %v1592 = vpop.f32.mrb[0].mxu0
        %1593 = vdwg.mxu0
        %v1594 = vadd.f32 %v1442, %v1589
        %v1595 = vld [vmem:[%s12] sm:$0x1]
        %v1596 = vld [vmem:[%s13] sm:$0x1]
        %v1597 = vsel %vm604, %v1594, 0.0
        %1598 = vadd.xlane.f32.xlu0 %v1597
        %v1599 = vpop.xlane.xlu0 %1598
        %v1600 = vmul.f32 %v1599, %v963
        %v1601 = vsub.f32 %v1594, %v1600
        %v1602 = vmul.f32 %v1601, %v1601
        %v1603 = vsel %vm604, %v1602, 0.0
        %1604 = vadd.xlane.f32.xlu0 %v1603
        %v1605 = vpop.xlane.xlu0 %1604
        %v1606 = vmul.f32 %v1605, %v963
        %v1607 = vadd.f32 %v1606, 1e-05
        %v1608 = vrsqrt.pop %v1607
        %v1609 = vmul.f32 %v1601, %v1608
        %v1611 = vlaneseq
        %v1612 = vshrl.u32 %v1611, 7
        %v1613 = vsub.s32 0, %v1612
        %v1614 = vrot.slane %v1595, %v1613
        %v1616 = vmul.f32 %v1609, %v1614
        %v1618 = vlaneseq
        %v1619 = vshrl.u32 %v1618, 7
        %v1620 = vsub.s32 0, %v1619
        %v1621 = vrot.slane %v1596, %v1620
        %v1623 = vadd.f32 %v1616, %v1621
        %1624 = vst.msk [vmem:[%s557] sm:$0xff] %vm604, %v1623
        %s1625 = sand.u32 %s411, 1
        %s1626 = scalar_lea.sflag [#allocation5], %s1625
        %s1627 = sand.u32 %s411, 1
        %s1628 = smul.addr %s1627, 8
        %s1629 = scalar_lea.vmem [#allocation4], %s1628
        // Predicated region
        $region89: #{tpu_custom_call.1} parent=87 // pred_check
          %p1630 = pneg %p421
        $region90: #{tpu_custom_call.1} parent=87 // pred_check_branch
          %1632 = sbr.rel (%p1630) target = $region92
        $region91: #{tpu_custom_call.1} parent=87 // pred_region
          %s1634 = ssub.s32 128, 128
          %1635 = vsyncadd %s1626, %s1634
          %s1636 = smul.addr %s36, 128
          %s1637 = scalar_lea.hbm %s18, %s1636
          %s1639 = sshll.u32 %s1629, 4
          %s1640 = int_to_ptr.vmem [resolvable:$true] %s1639
          %1642 = dma.vmem_to_hbm [thread:$0]  %s1640, 128, %s1637, %s1626
        $region92: #{tpu_custom_call.1} parent=87 // pred_fallthru
          _
      $region88: #{tpu_custom_call.1} parent=5 // pred_fallthru
        _
      %p1643 = scmp.le.s32.totalorder 2, %s31
      // Predicated region
      $region93: #{tpu_custom_call.1} parent=5 // pred_check
        %p1644 = pneg %p1643
      $region94: #{tpu_custom_call.1} parent=5 // pred_check_branch
        %1646 = sbr.rel (%p1644) target = $region96
      $region95: #{tpu_custom_call.1} parent=5 // pred_region
        %s1647 = ssub.s32 %s31, 2
        // Predicated region
        $region97: #{tpu_custom_call.1} parent=95 // pred_check
          %p1648 = pneg %p427
        $region98: #{tpu_custom_call.1} parent=95 // pred_check_branch
          %1650 = sbr.rel (%p1648) target = $region100
        $region99: #{tpu_custom_call.1} parent=95 // pred_region
          %s1651 = sand.u32 %s412, 1
          %s1652 = scalar_lea.sflag [#allocation5], %s1651
          %s1653 = sand.u32 %s412, 1
          %s1654 = smul.addr %s1653, 8
          %s1655 = scalar_lea.vmem [#allocation4], %s1654
          %1656 = dma.done %s1652, 128
        $region100: #{tpu_custom_call.1} parent=95 // pred_fallthru
          _
      $region96: #{tpu_custom_call.1} parent=5 // pred_fallthru
        _
    $region6: #{tpu_custom_call.1} parent=1 // loop_footer
      %s35 = sadd.s32 1, %s31
    $region7: #{tpu_custom_call.1} parent=1 // loop_footer_branch
      %30 = sbr.rel target = $region3
    $region8: #{tpu_custom_call.1} parent=1 // loop_exit
      _
    %1657 = vsyncpa [#allocation5], 1
    %s1658 = scalar_lea.sflag [#allocation5], 1
    %1659 = vsyncpa %s1658, 1

</llo_original>
